<compile_context>
chip_gen: v7x
topology: tpu7x:2x2x1
jax: 0.10.0
libtpu: 0.0.40
codegen_flags: <defaults>
</compile_context>

<pallas_src>
import functools

import jax
import jax.numpy as jnp
from jax.experimental import pallas as pl
from jax.experimental.pallas import tpu as pltpu


def _round_up(x, m):
    return (x + m - 1) // m * m


def _gru_kernel(x_ref, wi3_ref, wh2_ref, who_ref, b3_ref, out_ref, xproj_ref,
                *, seq_len, batch, hp):
    """Whole GRU recurrence in a single (grid-less) kernel invocation.

    x_ref    : (S*Bp, Fp)   time-major, lane-dense input
    wi3_ref  : (Fp, 3*Hp)   fused [W_iu | W_ir | W_io]
    wh2_ref  : (Hp, 2*Hp)   fused [W_hu | W_hr]
    who_ref  : (Hp, Hp)     W_ho (cannot fuse: needs r_t * h first)
    b3_ref   : (1, 3*Hp)    fused [b_u | b_r | b_o]
    out_ref  : (Bp, Hp)     final hidden state
    xproj_ref: (S*Bp, 3*Hp) scratch: hoisted input projection (+ bias)
    """
    # Hoisted input projection for ALL timesteps (the x-path of a GRU is not
    # recurrent): one wide MXU call, bias folded in with a single VPU pass
    # over the already-materialized slab — nothing bias-related remains on
    # the serial per-step critical path.
    xproj_ref[...] = (
        jnp.dot(x_ref[...], wi3_ref[...], preferred_element_type=jnp.float32)
        + b3_ref[...])

    def step(t, h):
        row = pl.multiple_of(t * batch, batch)            # sublane-aligned start
        xp = xproj_ref[pl.ds(row, batch), :]              # (Bp, 3Hp), bias incl.
        hh = jnp.dot(h, wh2_ref[...],
                     preferred_element_type=jnp.float32)  # (Bp, 2Hp)
        # One fused sigmoid (EUP) pass over the [u | r] slab.
        ur = jax.nn.sigmoid(xp[:, :2 * hp] + hh)
        u = ur[:, :hp]
        r = ur[:, hp:]
        # Candidate: (r * h) @ W_ho, matching the PyTorch precedence.
        o = jnp.tanh(xp[:, 2 * hp:]
                     + jnp.dot(r * h, who_ref[...],
                               preferred_element_type=jnp.float32))
        # (1-u)*h + u*o  ==  h + u*(o - h): one fewer VPU op on the h-chain.
        return h + u * (o - h)

    h0 = jnp.zeros((batch, hp), jnp.float32)
    h = jax.lax.fori_loop(0, seq_len, step, h0,
                          unroll=max(1, min(seq_len, 8)))
    out_ref[...] = h.astype(out_ref.dtype)


@jax.jit
def gru_forward(x, params):
    """x: (B, S, F) f32.  params: dict of GRU weights.  Returns (B, H)."""
    B, S, F = x.shape
    H = params["W_iu"].shape[1]

    f32 = jnp.float32
    Hp = _round_up(H, 128)     # lane-dense hidden width
    Fp = _round_up(F, 128)     # lane-dense feature width (see note below)
    Bp = _round_up(B, 8)       # sublane-aligned batch

    # Note: for long sequences with tiny F, padding F to 128 inflates the
    # x HBM stream ~Fp/F-fold; keeping K near true F would cut that traffic.
    # Negligible at these shapes, so the known-good lane-dense path is kept.

    def pad2(w, rows, cols):
        w = w.astype(f32)
        return jnp.pad(w, ((0, rows - w.shape[0]), (0, cols - w.shape[1])))

    def pad1(b):
        return jnp.pad(b.astype(f32), (0, Hp - H))

    # Fused, zero-padded weights (zero padding keeps padded hidden units at
    # exactly 0 for every timestep, so the math is unchanged).
    wi3 = jnp.concatenate([pad2(params["W_iu"], Fp, Hp),
                           pad2(params["W_ir"], Fp, Hp),
                           pad2(params["W_io"], Fp, Hp)], axis=1)   # (Fp, 3Hp)
    wh2 = jnp.concatenate([pad2(params["W_hu"], Hp, Hp),
                           pad2(params["W_hr"], Hp, Hp)], axis=1)   # (Hp, 2Hp)
    who = pad2(params["W_ho"], Hp, Hp)                              # (Hp, Hp)
    b3 = jnp.concatenate([pad1(params["b_u"]),
                          pad1(params["b_r"]),
                          pad1(params["b_o"])]).reshape(1, 3 * Hp)  # (1, 3Hp)

    # Time-major, lane-dense x: (S, Bp, Fp) -> (S*Bp, Fp) so step t is the
    # contiguous sublane-aligned row block [t*Bp, (t+1)*Bp).
    xt = jnp.transpose(x.astype(f32), (1, 0, 2))                    # (S, B, F)
    xt = jnp.pad(xt, ((0, 0), (0, Bp - B), (0, Fp - F)))
    x2d = xt.reshape(S * Bp, Fp)

    # VMEM budget from the actual resident footprint (+50% headroom), clamped
    # to stay under v7x's 64 MiB physical VMEM; v5e/v6e have more slack.
    resident_bytes = 4 * (
        S * Bp * Fp                                   # x2d
        + S * Bp * 3 * Hp                             # xproj scratch
        + Fp * 3 * Hp + Hp * 2 * Hp + Hp * Hp + 3 * Hp  # weights + bias
        + Bp * Hp)                                    # output
    vmem_limit = int(min(max(resident_bytes * 3 // 2 + (2 << 20), 16 << 20),
                         56 << 20))

    vmem_spec = pl.BlockSpec(memory_space=pltpu.MemorySpace.VMEM)

    out = pl.pallas_call(
        functools.partial(_gru_kernel, seq_len=S, batch=Bp, hp=Hp),
        out_shape=jax.ShapeDtypeStruct((Bp, Hp), f32),
        in_specs=[vmem_spec] * 5,
        out_specs=vmem_spec,
        scratch_shapes=[pltpu.VMEM((S * Bp, 3 * Hp), jnp.float32)],
        compiler_params=pltpu.CompilerParams(vmem_limit_bytes=vmem_limit),
    )(x2d, wi3, wh2, who, b3)

    return out[:B, :H].astype(x.dtype)


def init_params(key, input_size, hidden_size):
    """xavier_uniform_ for 2-D weights, zeros_ for biases (matches init_weights)."""
    def xavier(k, shape):
        fan_in, fan_out = shape
        bound = (6.0 / (fan_in + fan_out)) ** 0.5
        return jax.random.uniform(k, shape, jnp.float32, -bound, bound)

    ks = jax.random.split(key, 6)
    F, H = input_size, hidden_size
    return {
        "W_iu": xavier(ks[0], (F, H)), "W_hu": xavier(ks[1], (H, H)),
        "b_u": jnp.zeros((H,), jnp.float32),
        "W_ir": xavier(ks[2], (F, H)), "W_hr": xavier(ks[3], (H, H)),
        "b_r": jnp.zeros((H,), jnp.float32),
        "W_io": xavier(ks[4], (F, H)), "W_ho": xavier(ks[5], (H, H)),
        "b_o": jnp.zeros((H,), jnp.float32),
    }


def gru_reference(x, p):
    """Pure-JAX replica of the PyTorch forward, for verification."""
    B, S, F = x.shape
    H = p["W_iu"].shape[1]
    h = jnp.zeros((H,), jnp.float32)  # broadcasts just like the torch code
    for t in range(S):
        x_t = x[:, t, :]
        u = jax.nn.sigmoid(x_t @ p["W_iu"] + h @ p["W_hu"] + p["b_u"])
        r = jax.nn.sigmoid(x_t @ p["W_ir"] + h @ p["W_hr"] + p["b_r"])
        o = jnp.tanh(x_t @ p["W_io"] + (r * h) @ p["W_ho"] + p["b_o"])
        h = (1.0 - u) * h + u * o
    return h


if __name__ == "__main__":
    B, S, F, H = 8, 8, 4, 32

    key = jax.random.PRNGKey(0)
    kx, kp = jax.random.split(key)
    x = jax.random.normal(kx, (B, S, F), jnp.float32)
    params = init_params(kp, F, H)

    out = gru_forward(x, params)
    out = jax.block_until_ready(out)

    ref = gru_reference(x, params)
    assert out.shape == (B, H)
    assert jnp.allclose(out, ref, atol=1e-5, rtol=1e-5)

    print("KERNEL_OK")
</pallas_src>

<mosaic_0001>
module attributes {stable_mosaic.version = 11 : i64} {
  func.func @_gru_kernel(%arg0: memref<64x128xf32, #tpu.memory_space<vmem>>, %arg1: memref<128x384xf32, #tpu.memory_space<vmem>>, %arg2: memref<128x256xf32, #tpu.memory_space<vmem>>, %arg3: memref<128x128xf32, #tpu.memory_space<vmem>>, %arg4: memref<1x384xf32, #tpu.memory_space<vmem>>, %arg5: memref<8x128xf32, #tpu.memory_space<vmem>>, %arg6: memref<64x384xf32, #tpu.memory_space<vmem>>) attributes {dimension_semantics = [], scalar_prefetch = 0 : i64, scratch_operands = 1 : i64, tpu.core_type = #tpu.core_type<tc>} {
    %c0 = arith.constant 0 : index
    %c0_0 = arith.constant 0 : index
    %0 = vector.load %arg0[%c0, %c0_0] : memref<64x128xf32, #tpu.memory_space<vmem>>, vector<64x128xf32>
    %c0_1 = arith.constant 0 : index
    %c0_2 = arith.constant 0 : index
    %1 = vector.load %arg1[%c0_1, %c0_2] : memref<128x384xf32, #tpu.memory_space<vmem>>, vector<128x384xf32>
    %cst = arith.constant dense<0.000000e+00> : vector<64x384xf32>
    %2 = tpu.matmul %0, %1, %cst {dimension_numbers = #tpu.dot_dimension_numbers<[1], [0], [0], [1], [0, 0, 1, 1], [], []>} : vector<64x128xf32>, vector<128x384xf32>, vector<64x384xf32> -> vector<64x384xf32>
    %c0_3 = arith.constant 0 : index
    %c0_4 = arith.constant 0 : index
    %3 = vector.load %arg4[%c0_3, %c0_4] : memref<1x384xf32, #tpu.memory_space<vmem>>, vector<1x384xf32>
    %4 = vector.broadcast %3 : vector<1x384xf32> to vector<64x384xf32>
    %5 = arith.addf %2, %4 : vector<64x384xf32>
    %c0_5 = arith.constant 0 : index
    %c0_6 = arith.constant 0 : index
    %6 = vector.load %arg6[%c0_5, %c0_6] : memref<64x384xf32, #tpu.memory_space<vmem>>, vector<64x384xf32>
    tpu.vector_store %arg6[%c0_5, %c0_6], %5 {strides = array<i32>} : memref<64x384xf32, #tpu.memory_space<vmem>>, vector<64x384xf32>,
    %cst_7 = arith.constant 0.000000e+00 : f32
    %7 = vector.broadcast %cst_7 : f32 to vector<8x128xf32>
    %c0_i32 = arith.constant 0 : i32
    %c8_i32 = arith.constant 8 : i32
    %8 = arith.muli %c0_i32, %c8_i32 : i32
    %9 = tpu.assume_multiple %8, 8 : i32
    %10 = arith.index_cast %9 : i32 to index
    %c0_8 = arith.constant 0 : index
    %11 = vector.load %arg6[%10, %c0_8] : memref<64x384xf32, #tpu.memory_space<vmem>>, vector<8x384xf32>
    %c0_9 = arith.constant 0 : index
    %c0_10 = arith.constant 0 : index
    %12 = vector.load %arg2[%c0_9, %c0_10] : memref<128x256xf32, #tpu.memory_space<vmem>>, vector<128x256xf32>
    %cst_11 = arith.constant dense<0.000000e+00> : vector<8x256xf32>
    %13 = tpu.matmul %7, %12, %cst_11 {dimension_numbers = #tpu.dot_dimension_numbers<[1], [0], [0], [1], [0, 0, 1, 1], [], []>} : vector<8x128xf32>, vector<128x256xf32>, vector<8x256xf32> -> vector<8x256xf32>
    %14 = vector.extract_strided_slice %11 {offsets = [0, 0], sizes = [8, 256], strides = [1, 1]} : vector<8x384xf32> to vector<8x256xf32>
    %15 = arith.addf %14, %13 : vector<8x256xf32>
    %16 = arith.negf %15 : vector<8x256xf32>
    %17 = math.exp %16 : vector<8x256xf32>
    %cst_12 = arith.constant 1.000000e+00 : f32
    %18 = vector.broadcast %cst_12 : f32 to vector<8x256xf32>
    %19 = arith.addf %18, %17 : vector<8x256xf32>
    %20 = arith.divf %18, %19 : vector<8x256xf32>
    %21 = vector.extract_strided_slice %20 {offsets = [0, 0], sizes = [8, 128], strides = [1, 1]} : vector<8x256xf32> to vector<8x128xf32>
    %22 = vector.extract_strided_slice %20 {offsets = [0, 128], sizes = [8, 128], strides = [1, 1]} : vector<8x256xf32> to vector<8x128xf32>
    %23 = vector.extract_strided_slice %11 {offsets = [0, 256], sizes = [8, 128], strides = [1, 1]} : vector<8x384xf32> to vector<8x128xf32>
    %24 = arith.mulf %22, %7 : vector<8x128xf32>
    %c0_13 = arith.constant 0 : index
    %c0_14 = arith.constant 0 : index
    %25 = vector.load %arg3[%c0_13, %c0_14] : memref<128x128xf32, #tpu.memory_space<vmem>>, vector<128x128xf32>
    %cst_15 = arith.constant dense<0.000000e+00> : vector<8x128xf32>
    %26 = tpu.matmul %24, %25, %cst_15 {dimension_numbers = #tpu.dot_dimension_numbers<[1], [0], [0], [1], [0, 0, 1, 1], [], []>} : vector<8x128xf32>, vector<128x128xf32>, vector<8x128xf32> -> vector<8x128xf32>
    %27 = arith.addf %23, %26 : vector<8x128xf32>
    %28 = math.tanh %27 : vector<8x128xf32>
    %29 = arith.subf %28, %7 : vector<8x128xf32>
    %30 = arith.mulf %21, %29 : vector<8x128xf32>
    %31 = arith.addf %7, %30 : vector<8x128xf32>
    %c1_i32 = arith.constant 1 : i32
    %c8_i32_16 = arith.constant 8 : i32
    %32 = arith.muli %c1_i32, %c8_i32_16 : i32
    %33 = tpu.assume_multiple %32, 8 : i32
    %34 = arith.index_cast %33 : i32 to index
    %c0_17 = arith.constant 0 : index
    %35 = vector.load %arg6[%34, %c0_17] : memref<64x384xf32, #tpu.memory_space<vmem>>, vector<8x384xf32>
    %c0_18 = arith.constant 0 : index
    %c0_19 = arith.constant 0 : index
    %36 = vector.load %arg2[%c0_18, %c0_19] : memref<128x256xf32, #tpu.memory_space<vmem>>, vector<128x256xf32>
    %cst_20 = arith.constant dense<0.000000e+00> : vector<8x256xf32>
    %37 = tpu.matmul %31, %36, %cst_20 {dimension_numbers = #tpu.dot_dimension_numbers<[1], [0], [0], [1], [0, 0, 1, 1], [], []>} : vector<8x128xf32>, vector<128x256xf32>, vector<8x256xf32> -> vector<8x256xf32>
    %38 = vector.extract_strided_slice %35 {offsets = [0, 0], sizes = [8, 256], strides = [1, 1]} : vector<8x384xf32> to vector<8x256xf32>
    %39 = arith.addf %38, %37 : vector<8x256xf32>
    %40 = arith.negf %39 : vector<8x256xf32>
    %41 = math.exp %40 : vector<8x256xf32>
    %cst_21 = arith.constant 1.000000e+00 : f32
    %42 = vector.broadcast %cst_21 : f32 to vector<8x256xf32>
    %43 = arith.addf %42, %41 : vector<8x256xf32>
    %44 = arith.divf %42, %43 : vector<8x256xf32>
    %45 = vector.extract_strided_slice %44 {offsets = [0, 0], sizes = [8, 128], strides = [1, 1]} : vector<8x256xf32> to vector<8x128xf32>
    %46 = vector.extract_strided_slice %44 {offsets = [0, 128], sizes = [8, 128], strides = [1, 1]} : vector<8x256xf32> to vector<8x128xf32>
    %47 = vector.extract_strided_slice %35 {offsets = [0, 256], sizes = [8, 128], strides = [1, 1]} : vector<8x384xf32> to vector<8x128xf32>
    %48 = arith.mulf %46, %31 : vector<8x128xf32>
    %c0_22 = arith.constant 0 : index
    %c0_23 = arith.constant 0 : index
    %49 = vector.load %arg3[%c0_22, %c0_23] : memref<128x128xf32, #tpu.memory_space<vmem>>, vector<128x128xf32>
    %cst_24 = arith.constant dense<0.000000e+00> : vector<8x128xf32>
    %50 = tpu.matmul %48, %49, %cst_24 {dimension_numbers = #tpu.dot_dimension_numbers<[1], [0], [0], [1], [0, 0, 1, 1], [], []>} : vector<8x128xf32>, vector<128x128xf32>, vector<8x128xf32> -> vector<8x128xf32>
    %51 = arith.addf %47, %50 : vector<8x128xf32>
    %52 = math.tanh %51 : vector<8x128xf32>
    %53 = arith.subf %52, %31 : vector<8x128xf32>
    %54 = arith.mulf %45, %53 : vector<8x128xf32>
    %55 = arith.addf %31, %54 : vector<8x128xf32>
    %c2_i32 = arith.constant 2 : i32
    %c8_i32_25 = arith.constant 8 : i32
    %56 = arith.muli %c2_i32, %c8_i32_25 : i32
    %57 = tpu.assume_multiple %56, 8 : i32
    %58 = arith.index_cast %57 : i32 to index
    %c0_26 = arith.constant 0 : index
    %59 = vector.load %arg6[%58, %c0_26] : memref<64x384xf32, #tpu.memory_space<vmem>>, vector<8x384xf32>
    %c0_27 = arith.constant 0 : index
    %c0_28 = arith.constant 0 : index
    %60 = vector.load %arg2[%c0_27, %c0_28] : memref<128x256xf32, #tpu.memory_space<vmem>>, vector<128x256xf32>
    %cst_29 = arith.constant dense<0.000000e+00> : vector<8x256xf32>
    %61 = tpu.matmul %55, %60, %cst_29 {dimension_numbers = #tpu.dot_dimension_numbers<[1], [0], [0], [1], [0, 0, 1, 1], [], []>} : vector<8x128xf32>, vector<128x256xf32>, vector<8x256xf32> -> vector<8x256xf32>
    %62 = vector.extract_strided_slice %59 {offsets = [0, 0], sizes = [8, 256], strides = [1, 1]} : vector<8x384xf32> to vector<8x256xf32>
    %63 = arith.addf %62, %61 : vector<8x256xf32>
    %64 = arith.negf %63 : vector<8x256xf32>
    %65 = math.exp %64 : vector<8x256xf32>
    %cst_30 = arith.constant 1.000000e+00 : f32
    %66 = vector.broadcast %cst_30 : f32 to vector<8x256xf32>
    %67 = arith.addf %66, %65 : vector<8x256xf32>
    %68 = arith.divf %66, %67 : vector<8x256xf32>
    %69 = vector.extract_strided_slice %68 {offsets = [0, 0], sizes = [8, 128], strides = [1, 1]} : vector<8x256xf32> to vector<8x128xf32>
    %70 = vector.extract_strided_slice %68 {offsets = [0, 128], sizes = [8, 128], strides = [1, 1]} : vector<8x256xf32> to vector<8x128xf32>
    %71 = vector.extract_strided_slice %59 {offsets = [0, 256], sizes = [8, 128], strides = [1, 1]} : vector<8x384xf32> to vector<8x128xf32>
    %72 = arith.mulf %70, %55 : vector<8x128xf32>
    %c0_31 = arith.constant 0 : index
    %c0_32 = arith.constant 0 : index
    %73 = vector.load %arg3[%c0_31, %c0_32] : memref<128x128xf32, #tpu.memory_space<vmem>>, vector<128x128xf32>
    %cst_33 = arith.constant dense<0.000000e+00> : vector<8x128xf32>
    %74 = tpu.matmul %72, %73, %cst_33 {dimension_numbers = #tpu.dot_dimension_numbers<[1], [0], [0], [1], [0, 0, 1, 1], [], []>} : vector<8x128xf32>, vector<128x128xf32>, vector<8x128xf32> -> vector<8x128xf32>
    %75 = arith.addf %71, %74 : vector<8x128xf32>
    %76 = math.tanh %75 : vector<8x128xf32>
    %77 = arith.subf %76, %55 : vector<8x128xf32>
    %78 = arith.mulf %69, %77 : vector<8x128xf32>
    %79 = arith.addf %55, %78 : vector<8x128xf32>
    %c3_i32 = arith.constant 3 : i32
    %c8_i32_34 = arith.constant 8 : i32
    %80 = arith.muli %c3_i32, %c8_i32_34 : i32
    %81 = tpu.assume_multiple %80, 8 : i32
    %82 = arith.index_cast %81 : i32 to index
    %c0_35 = arith.constant 0 : index
    %83 = vector.load %arg6[%82, %c0_35] : memref<64x384xf32, #tpu.memory_space<vmem>>, vector<8x384xf32>
    %c0_36 = arith.constant 0 : index
    %c0_37 = arith.constant 0 : index
    %84 = vector.load %arg2[%c0_36, %c0_37] : memref<128x256xf32, #tpu.memory_space<vmem>>, vector<128x256xf32>
    %cst_38 = arith.constant dense<0.000000e+00> : vector<8x256xf32>
    %85 = tpu.matmul %79, %84, %cst_38 {dimension_numbers = #tpu.dot_dimension_numbers<[1], [0], [0], [1], [0, 0, 1, 1], [], []>} : vector<8x128xf32>, vector<128x256xf32>, vector<8x256xf32> -> vector<8x256xf32>
    %86 = vector.extract_strided_slice %83 {offsets = [0, 0], sizes = [8, 256], strides = [1, 1]} : vector<8x384xf32> to vector<8x256xf32>
    %87 = arith.addf %86, %85 : vector<8x256xf32>
    %88 = arith.negf %87 : vector<8x256xf32>
    %89 = math.exp %88 : vector<8x256xf32>
    %cst_39 = arith.constant 1.000000e+00 : f32
    %90 = vector.broadcast %cst_39 : f32 to vector<8x256xf32>
    %91 = arith.addf %90, %89 : vector<8x256xf32>
    %92 = arith.divf %90, %91 : vector<8x256xf32>
    %93 = vector.extract_strided_slice %92 {offsets = [0, 0], sizes = [8, 128], strides = [1, 1]} : vector<8x256xf32> to vector<8x128xf32>
    %94 = vector.extract_strided_slice %92 {offsets = [0, 128], sizes = [8, 128], strides = [1, 1]} : vector<8x256xf32> to vector<8x128xf32>
    %95 = vector.extract_strided_slice %83 {offsets = [0, 256], sizes = [8, 128], strides = [1, 1]} : vector<8x384xf32> to vector<8x128xf32>
    %96 = arith.mulf %94, %79 : vector<8x128xf32>
    %c0_40 = arith.constant 0 : index
    %c0_41 = arith.constant 0 : index
    %97 = vector.load %arg3[%c0_40, %c0_41] : memref<128x128xf32, #tpu.memory_space<vmem>>, vector<128x128xf32>
    %cst_42 = arith.constant dense<0.000000e+00> : vector<8x128xf32>
    %98 = tpu.matmul %96, %97, %cst_42 {dimension_numbers = #tpu.dot_dimension_numbers<[1], [0], [0], [1], [0, 0, 1, 1], [], []>} : vector<8x128xf32>, vector<128x128xf32>, vector<8x128xf32> -> vector<8x128xf32>
    %99 = arith.addf %95, %98 : vector<8x128xf32>
    %100 = math.tanh %99 : vector<8x128xf32>
    %101 = arith.subf %100, %79 : vector<8x128xf32>
    %102 = arith.mulf %93, %101 : vector<8x128xf32>
    %103 = arith.addf %79, %102 : vector<8x128xf32>
    %c4_i32 = arith.constant 4 : i32
    %c8_i32_43 = arith.constant 8 : i32
    %104 = arith.muli %c4_i32, %c8_i32_43 : i32
    %105 = tpu.assume_multiple %104, 8 : i32
    %106 = arith.index_cast %105 : i32 to index
    %c0_44 = arith.constant 0 : index
    %107 = vector.load %arg6[%106, %c0_44] : memref<64x384xf32, #tpu.memory_space<vmem>>, vector<8x384xf32>
    %c0_45 = arith.constant 0 : index
    %c0_46 = arith.constant 0 : index
    %108 = vector.load %arg2[%c0_45, %c0_46] : memref<128x256xf32, #tpu.memory_space<vmem>>, vector<128x256xf32>
    %cst_47 = arith.constant dense<0.000000e+00> : vector<8x256xf32>
    %109 = tpu.matmul %103, %108, %cst_47 {dimension_numbers = #tpu.dot_dimension_numbers<[1], [0], [0], [1], [0, 0, 1, 1], [], []>} : vector<8x128xf32>, vector<128x256xf32>, vector<8x256xf32> -> vector<8x256xf32>
    %110 = vector.extract_strided_slice %107 {offsets = [0, 0], sizes = [8, 256], strides = [1, 1]} : vector<8x384xf32> to vector<8x256xf32>
    %111 = arith.addf %110, %109 : vector<8x256xf32>
    %112 = arith.negf %111 : vector<8x256xf32>
    %113 = math.exp %112 : vector<8x256xf32>
    %cst_48 = arith.constant 1.000000e+00 : f32
    %114 = vector.broadcast %cst_48 : f32 to vector<8x256xf32>
    %115 = arith.addf %114, %113 : vector<8x256xf32>
    %116 = arith.divf %114, %115 : vector<8x256xf32>
    %117 = vector.extract_strided_slice %116 {offsets = [0, 0], sizes = [8, 128], strides = [1, 1]} : vector<8x256xf32> to vector<8x128xf32>
    %118 = vector.extract_strided_slice %116 {offsets = [0, 128], sizes = [8, 128], strides = [1, 1]} : vector<8x256xf32> to vector<8x128xf32>
    %119 = vector.extract_strided_slice %107 {offsets = [0, 256], sizes = [8, 128], strides = [1, 1]} : vector<8x384xf32> to vector<8x128xf32>
    %120 = arith.mulf %118, %103 : vector<8x128xf32>
    %c0_49 = arith.constant 0 : index
    %c0_50 = arith.constant 0 : index
    %121 = vector.load %arg3[%c0_49, %c0_50] : memref<128x128xf32, #tpu.memory_space<vmem>>, vector<128x128xf32>
    %cst_51 = arith.constant dense<0.000000e+00> : vector<8x128xf32>
    %122 = tpu.matmul %120, %121, %cst_51 {dimension_numbers = #tpu.dot_dimension_numbers<[1], [0], [0], [1], [0, 0, 1, 1], [], []>} : vector<8x128xf32>, vector<128x128xf32>, vector<8x128xf32> -> vector<8x128xf32>
    %123 = arith.addf %119, %122 : vector<8x128xf32>
    %124 = math.tanh %123 : vector<8x128xf32>
    %125 = arith.subf %124, %103 : vector<8x128xf32>
    %126 = arith.mulf %117, %125 : vector<8x128xf32>
    %127 = arith.addf %103, %126 : vector<8x128xf32>
    %c5_i32 = arith.constant 5 : i32
    %c8_i32_52 = arith.constant 8 : i32
    %128 = arith.muli %c5_i32, %c8_i32_52 : i32
    %129 = tpu.assume_multiple %128, 8 : i32
    %130 = arith.index_cast %129 : i32 to index
    %c0_53 = arith.constant 0 : index
    %131 = vector.load %arg6[%130, %c0_53] : memref<64x384xf32, #tpu.memory_space<vmem>>, vector<8x384xf32>
    %c0_54 = arith.constant 0 : index
    %c0_55 = arith.constant 0 : index
    %132 = vector.load %arg2[%c0_54, %c0_55] : memref<128x256xf32, #tpu.memory_space<vmem>>, vector<128x256xf32>
    %cst_56 = arith.constant dense<0.000000e+00> : vector<8x256xf32>
    %133 = tpu.matmul %127, %132, %cst_56 {dimension_numbers = #tpu.dot_dimension_numbers<[1], [0], [0], [1], [0, 0, 1, 1], [], []>} : vector<8x128xf32>, vector<128x256xf32>, vector<8x256xf32> -> vector<8x256xf32>
    %134 = vector.extract_strided_slice %131 {offsets = [0, 0], sizes = [8, 256], strides = [1, 1]} : vector<8x384xf32> to vector<8x256xf32>
    %135 = arith.addf %134, %133 : vector<8x256xf32>
    %136 = arith.negf %135 : vector<8x256xf32>
    %137 = math.exp %136 : vector<8x256xf32>
    %cst_57 = arith.constant 1.000000e+00 : f32
    %138 = vector.broadcast %cst_57 : f32 to vector<8x256xf32>
    %139 = arith.addf %138, %137 : vector<8x256xf32>
    %140 = arith.divf %138, %139 : vector<8x256xf32>
    %141 = vector.extract_strided_slice %140 {offsets = [0, 0], sizes = [8, 128], strides = [1, 1]} : vector<8x256xf32> to vector<8x128xf32>
    %142 = vector.extract_strided_slice %140 {offsets = [0, 128], sizes = [8, 128], strides = [1, 1]} : vector<8x256xf32> to vector<8x128xf32>
    %143 = vector.extract_strided_slice %131 {offsets = [0, 256], sizes = [8, 128], strides = [1, 1]} : vector<8x384xf32> to vector<8x128xf32>
    %144 = arith.mulf %142, %127 : vector<8x128xf32>
    %c0_58 = arith.constant 0 : index
    %c0_59 = arith.constant 0 : index
    %145 = vector.load %arg3[%c0_58, %c0_59] : memref<128x128xf32, #tpu.memory_space<vmem>>, vector<128x128xf32>
    %cst_60 = arith.constant dense<0.000000e+00> : vector<8x128xf32>
    %146 = tpu.matmul %144, %145, %cst_60 {dimension_numbers = #tpu.dot_dimension_numbers<[1], [0], [0], [1], [0, 0, 1, 1], [], []>} : vector<8x128xf32>, vector<128x128xf32>, vector<8x128xf32> -> vector<8x128xf32>
    %147 = arith.addf %143, %146 : vector<8x128xf32>
    %148 = math.tanh %147 : vector<8x128xf32>
    %149 = arith.subf %148, %127 : vector<8x128xf32>
    %150 = arith.mulf %141, %149 : vector<8x128xf32>
    %151 = arith.addf %127, %150 : vector<8x128xf32>
    %c6_i32 = arith.constant 6 : i32
    %c8_i32_61 = arith.constant 8 : i32
    %152 = arith.muli %c6_i32, %c8_i32_61 : i32
    %153 = tpu.assume_multiple %152, 8 : i32
    %154 = arith.index_cast %153 : i32 to index
    %c0_62 = arith.constant 0 : index
    %155 = vector.load %arg6[%154, %c0_62] : memref<64x384xf32, #tpu.memory_space<vmem>>, vector<8x384xf32>
    %c0_63 = arith.constant 0 : index
    %c0_64 = arith.constant 0 : index
    %156 = vector.load %arg2[%c0_63, %c0_64] : memref<128x256xf32, #tpu.memory_space<vmem>>, vector<128x256xf32>
    %cst_65 = arith.constant dense<0.000000e+00> : vector<8x256xf32>
    %157 = tpu.matmul %151, %156, %cst_65 {dimension_numbers = #tpu.dot_dimension_numbers<[1], [0], [0], [1], [0, 0, 1, 1], [], []>} : vector<8x128xf32>, vector<128x256xf32>, vector<8x256xf32> -> vector<8x256xf32>
    %158 = vector.extract_strided_slice %155 {offsets = [0, 0], sizes = [8, 256], strides = [1, 1]} : vector<8x384xf32> to vector<8x256xf32>
    %159 = arith.addf %158, %157 : vector<8x256xf32>
    %160 = arith.negf %159 : vector<8x256xf32>
    %161 = math.exp %160 : vector<8x256xf32>
    %cst_66 = arith.constant 1.000000e+00 : f32
    %162 = vector.broadcast %cst_66 : f32 to vector<8x256xf32>
    %163 = arith.addf %162, %161 : vector<8x256xf32>
    %164 = arith.divf %162, %163 : vector<8x256xf32>
    %165 = vector.extract_strided_slice %164 {offsets = [0, 0], sizes = [8, 128], strides = [1, 1]} : vector<8x256xf32> to vector<8x128xf32>
    %166 = vector.extract_strided_slice %164 {offsets = [0, 128], sizes = [8, 128], strides = [1, 1]} : vector<8x256xf32> to vector<8x128xf32>
    %167 = vector.extract_strided_slice %155 {offsets = [0, 256], sizes = [8, 128], strides = [1, 1]} : vector<8x384xf32> to vector<8x128xf32>
    %168 = arith.mulf %166, %151 : vector<8x128xf32>
    %c0_67 = arith.constant 0 : index
    %c0_68 = arith.constant 0 : index
    %169 = vector.load %arg3[%c0_67, %c0_68] : memref<128x128xf32, #tpu.memory_space<vmem>>, vector<128x128xf32>
    %cst_69 = arith.constant dense<0.000000e+00> : vector<8x128xf32>
    %170 = tpu.matmul %168, %169, %cst_69 {dimension_numbers = #tpu.dot_dimension_numbers<[1], [0], [0], [1], [0, 0, 1, 1], [], []>} : vector<8x128xf32>, vector<128x128xf32>, vector<8x128xf32> -> vector<8x128xf32>
    %171 = arith.addf %167, %170 : vector<8x128xf32>
    %172 = math.tanh %171 : vector<8x128xf32>
    %173 = arith.subf %172, %151 : vector<8x128xf32>
    %174 = arith.mulf %165, %173 : vector<8x128xf32>
    %175 = arith.addf %151, %174 : vector<8x128xf32>
    %c7_i32 = arith.constant 7 : i32
    %c8_i32_70 = arith.constant 8 : i32
    %176 = arith.muli %c7_i32, %c8_i32_70 : i32
    %177 = tpu.assume_multiple %176, 8 : i32
    %178 = arith.index_cast %177 : i32 to index
    %c0_71 = arith.constant 0 : index
    %179 = vector.load %arg6[%178, %c0_71] : memref<64x384xf32, #tpu.memory_space<vmem>>, vector<8x384xf32>
    %c0_72 = arith.constant 0 : index
    %c0_73 = arith.constant 0 : index
    %180 = vector.load %arg2[%c0_72, %c0_73] : memref<128x256xf32, #tpu.memory_space<vmem>>, vector<128x256xf32>
    %cst_74 = arith.constant dense<0.000000e+00> : vector<8x256xf32>
    %181 = tpu.matmul %175, %180, %cst_74 {dimension_numbers = #tpu.dot_dimension_numbers<[1], [0], [0], [1], [0, 0, 1, 1], [], []>} : vector<8x128xf32>, vector<128x256xf32>, vector<8x256xf32> -> vector<8x256xf32>
    %182 = vector.extract_strided_slice %179 {offsets = [0, 0], sizes = [8, 256], strides = [1, 1]} : vector<8x384xf32> to vector<8x256xf32>
    %183 = arith.addf %182, %181 : vector<8x256xf32>
    %184 = arith.negf %183 : vector<8x256xf32>
    %185 = math.exp %184 : vector<8x256xf32>
    %cst_75 = arith.constant 1.000000e+00 : f32
    %186 = vector.broadcast %cst_75 : f32 to vector<8x256xf32>
    %187 = arith.addf %186, %185 : vector<8x256xf32>
    %188 = arith.divf %186, %187 : vector<8x256xf32>
    %189 = vector.extract_strided_slice %188 {offsets = [0, 0], sizes = [8, 128], strides = [1, 1]} : vector<8x256xf32> to vector<8x128xf32>
    %190 = vector.extract_strided_slice %188 {offsets = [0, 128], sizes = [8, 128], strides = [1, 1]} : vector<8x256xf32> to vector<8x128xf32>
    %191 = vector.extract_strided_slice %179 {offsets = [0, 256], sizes = [8, 128], strides = [1, 1]} : vector<8x384xf32> to vector<8x128xf32>
    %192 = arith.mulf %190, %175 : vector<8x128xf32>
    %c0_76 = arith.constant 0 : index
    %c0_77 = arith.constant 0 : index
    %193 = vector.load %arg3[%c0_76, %c0_77] : memref<128x128xf32, #tpu.memory_space<vmem>>, vector<128x128xf32>
    %cst_78 = arith.constant dense<0.000000e+00> : vector<8x128xf32>
    %194 = tpu.matmul %192, %193, %cst_78 {dimension_numbers = #tpu.dot_dimension_numbers<[1], [0], [0], [1], [0, 0, 1, 1], [], []>} : vector<8x128xf32>, vector<128x128xf32>, vector<8x128xf32> -> vector<8x128xf32>
    %195 = arith.addf %191, %194 : vector<8x128xf32>
    %196 = math.tanh %195 : vector<8x128xf32>
    %197 = arith.subf %196, %175 : vector<8x128xf32>
    %198 = arith.mulf %189, %197 : vector<8x128xf32>
    %199 = arith.addf %175, %198 : vector<8x128xf32>
    %c8_i32_79 = arith.constant 8 : i32
    %c0_80 = arith.constant 0 : index
    %c0_81 = arith.constant 0 : index
    %200 = vector.load %arg5[%c0_80, %c0_81] : memref<8x128xf32, #tpu.memory_space<vmem>>, vector<8x128xf32>
    tpu.vector_store %arg5[%c0_80, %c0_81], %199 {strides = array<i32>} : memref<8x128xf32, #tpu.memory_space<vmem>>, vector<8x128xf32>,
    return
  }
}

</mosaic_0001>

<llo_original>
// kernel: gru_forward.1
$region0: #{gru_forward.1}
  #allocation0 [shape = 'u32[]', space=smem, size = 0x4, offset = 0x4, fixed_abs, tag = 'smem constant byte address 0x4 - core index']
  #allocation1 [shape = 'u32[144,128]{1,0:T(1,128)}', space=vmem, size = 0x12000, scoped, tag = 'internal scratch']
  #allocation2 [shape = 'f32[64,384]{1,0:T(8,128)}', space=vmem, size = 0x18000, scoped, tag = 'scratch operand']
  %s0 = inlined_call_operand.vmem [shape: f32[64,128], index: 0, kind: input, shape index: {}]
  %s1 = inlined_call_operand.vmem [shape: f32[128,384], index: 1, kind: input, shape index: {}]
  %s2 = inlined_call_operand.vmem [shape: f32[128,256], index: 2, kind: input, shape index: {}]
  %s3 = inlined_call_operand.vmem [shape: f32[128,128], index: 3, kind: input, shape index: {}]
  %s4 = inlined_call_operand.vmem [shape: f32[1,384], index: 4, kind: input, shape index: {}]
  %s5 = inlined_call_operand.hbm [shape: f32[8,128], index: 5, kind: output, shape index: {}]
  %s6 = sld [smem:[#allocation0]]
  $region30: #{gru_forward.1} parent=0
    _
  %s8 = ssub.s32 1, %s6
  %s9 = scalar_select 0, %s8, %s6
  $region1: #{gru_forward.1} parent=0
    #allocation3 [shape = 'u8[4096]{0}', space=vmem, size = 0x1000, scoped, tag = 'output window, operand 0, single buffered']
    #allocation4 [shape = 's32[1]{0}', space=sflag, size = 0x4, scoped, tag = 'scoped memory for gru_forward.1']
    %10 = vsyncpa [#allocation4], 0
    // Predicated region
    $region2: #{gru_forward.1} parent=1 // pred_check
      _
    $region3: #{gru_forward.1} parent=1 // pred_check_branch
      %12 = sbr.rel (0) target = $region5
    $region4: #{gru_forward.1} parent=1 // pred_region
      _
    $region5: #{gru_forward.1} parent=1 // pred_fallthru
      _
    // Predicated region
    $region6: #{gru_forward.1} parent=1 // pred_check
      _
    $region7: #{gru_forward.1} parent=1 // pred_check_branch
      %14 = sbr.rel (0) target = $region9
    $region8: #{gru_forward.1} parent=1 // pred_region
      _
    $region9: #{gru_forward.1} parent=1 // pred_fallthru
      _
    // Predicated region
    $region10: #{gru_forward.1} parent=1 // pred_check
      _
    $region11: #{gru_forward.1} parent=1 // pred_check_branch
      %16 = sbr.rel (0) target = $region13
    $region12: #{gru_forward.1} parent=1 // pred_region
      _
    $region13: #{gru_forward.1} parent=1 // pred_fallthru
      _
    // Predicated region
    $region14: #{gru_forward.1} parent=1 // pred_check
      _
    $region15: #{gru_forward.1} parent=1 // pred_check_branch
      %18 = sbr.rel (0) target = $region17
    $region16: #{gru_forward.1} parent=1 // pred_region
      _
    $region17: #{gru_forward.1} parent=1 // pred_fallthru
      _
    // Predicated region
    $region18: #{gru_forward.1} parent=1 // pred_check
      _
    $region19: #{gru_forward.1} parent=1 // pred_check_branch
      %20 = sbr.rel (0) target = $region21
    $region20: #{gru_forward.1} parent=1 // pred_region
      _
    $region21: #{gru_forward.1} parent=1 // pred_fallthru
      _
    %v21 = vld [vmem:[%s0] sm:$0xff]
    %v22 = vld [vmem:[%s0 + $0x8] sm:$0xff]
    %v23 = vld [vmem:[%s0 + $0x10] sm:$0xff]
    %v24 = vld [vmem:[%s0 + $0x18] sm:$0xff]
    %v25 = vld [vmem:[%s0 + $0x20] sm:$0xff]
    %v26 = vld [vmem:[%s0 + $0x28] sm:$0xff]
    %v27 = vld [vmem:[%s0 + $0x30] sm:$0xff]
    %v28 = vld [vmem:[%s0 + $0x38] sm:$0xff]
    %v29 = vld [vmem:[%s1] sm:$0xff]
    %v30 = vld [vmem:[%s1 + $0x8] sm:$0xff]
    %v31 = vld [vmem:[%s1 + $0x10] sm:$0xff]
    %v32 = vld [vmem:[%s1 + $0x18] sm:$0xff]
    %v33 = vld [vmem:[%s1 + $0x20] sm:$0xff]
    %v34 = vld [vmem:[%s1 + $0x28] sm:$0xff]
    %v35 = vld [vmem:[%s1 + $0x30] sm:$0xff]
    %v36 = vld [vmem:[%s1 + $0x38] sm:$0xff]
    %v37 = vld [vmem:[%s1 + $0x40] sm:$0xff]
    %v38 = vld [vmem:[%s1 + $0x48] sm:$0xff]
    %v39 = vld [vmem:[%s1 + $0x50] sm:$0xff]
    %v40 = vld [vmem:[%s1 + $0x58] sm:$0xff]
    %v41 = vld [vmem:[%s1 + $0x60] sm:$0xff]
    %v42 = vld [vmem:[%s1 + $0x68] sm:$0xff]
    %v43 = vld [vmem:[%s1 + $0x70] sm:$0xff]
    %v44 = vld [vmem:[%s1 + $0x78] sm:$0xff]
    %v45 = vld [vmem:[%s1 + $0x80] sm:$0xff]
    %v46 = vld [vmem:[%s1 + $0x88] sm:$0xff]
    %v47 = vld [vmem:[%s1 + $0x90] sm:$0xff]
    %v48 = vld [vmem:[%s1 + $0x98] sm:$0xff]
    %v49 = vld [vmem:[%s1 + $0xa0] sm:$0xff]
    %v50 = vld [vmem:[%s1 + $0xa8] sm:$0xff]
    %v51 = vld [vmem:[%s1 + $0xb0] sm:$0xff]
    %v52 = vld [vmem:[%s1 + $0xb8] sm:$0xff]
    %v53 = vld [vmem:[%s1 + $0xc0] sm:$0xff]
    %v54 = vld [vmem:[%s1 + $0xc8] sm:$0xff]
    %v55 = vld [vmem:[%s1 + $0xd0] sm:$0xff]
    %v56 = vld [vmem:[%s1 + $0xd8] sm:$0xff]
    %v57 = vld [vmem:[%s1 + $0xe0] sm:$0xff]
    %v58 = vld [vmem:[%s1 + $0xe8] sm:$0xff]
    %v59 = vld [vmem:[%s1 + $0xf0] sm:$0xff]
    %v60 = vld [vmem:[%s1 + $0xf8] sm:$0xff]
    %v61 = vld [vmem:[%s1 + $0x100] sm:$0xff]
    %v62 = vld [vmem:[%s1 + $0x108] sm:$0xff]
    %v63 = vld [vmem:[%s1 + $0x110] sm:$0xff]
    %v64 = vld [vmem:[%s1 + $0x118] sm:$0xff]
    %v65 = vld [vmem:[%s1 + $0x120] sm:$0xff]
    %v66 = vld [vmem:[%s1 + $0x128] sm:$0xff]
    %v67 = vld [vmem:[%s1 + $0x130] sm:$0xff]
    %v68 = vld [vmem:[%s1 + $0x138] sm:$0xff]
    %v69 = vld [vmem:[%s1 + $0x140] sm:$0xff]
    %v70 = vld [vmem:[%s1 + $0x148] sm:$0xff]
    %v71 = vld [vmem:[%s1 + $0x150] sm:$0xff]
    %v72 = vld [vmem:[%s1 + $0x158] sm:$0xff]
    %v73 = vld [vmem:[%s1 + $0x160] sm:$0xff]
    %v74 = vld [vmem:[%s1 + $0x168] sm:$0xff]
    %v75 = vld [vmem:[%s1 + $0x170] sm:$0xff]
    %v76 = vld [vmem:[%s1 + $0x178] sm:$0xff]
    %v77 = vld [vmem:[%s4] sm:$0x7]
    %v79 = vlaneseq
    %v80 = vshrl.u32 %v79, 7
    %v81 = vsub.s32 0, %v80
    %v82 = vrot.slane %v77, %v81
    %v83 = vlaneseq
    %v84 = vshrl.u32 %v83, 7
    %v85 = vsub.s32 1, %v84
    %v86 = vrot.slane %v77, %v85
    %v87 = vlaneseq
    %v88 = vshrl.u32 %v87, 7
    %v89 = vsub.s32 2, %v88
    %v90 = vrot.slane %v77, %v89
    %94 = vmatprep.subr.mxu0 %v30
    %95 = vmatpush1.msra.mxu0 %v29
    %96 = vmatprep.subr.mxu0 %v33
    %97 = vmatpush1.msra.mxu0 %v32
    %98 = vmatprep.subr.mxu0 %v36
    %99 = vmatpush1.msra.mxu0 %v35
    %100 = vmatprep.subr.mxu0 %v39
    %101 = vmatpush1.msra.mxu0 %v38
    %102 = vmatprep.subr.mxu0 %v42
    %103 = vmatpush1.msra.mxu0 %v41
    %104 = vmatprep.subr.mxu0 %v45
    %105 = vmatpush1.msra.mxu0 %v44
    %106 = vmatprep.subr.mxu0 %v48
    %107 = vmatpush1.msra.mxu0 %v47
    %108 = vmatprep.subr.mxu0 %v51
    %109 = vmatpush1.msra.mxu0 %v50
    %110 = vmatprep.subr.mxu0 %v54
    %111 = vmatpush1.msra.mxu0 %v53
    %112 = vmatprep.subr.mxu0 %v57
    %113 = vmatpush1.msra.mxu0 %v56
    %114 = vmatprep.subr.mxu0 %v60
    %115 = vmatpush1.msra.mxu0 %v59
    %116 = vmatprep.subr.mxu0 %v63
    %117 = vmatpush1.msra.mxu0 %v62
    %118 = vmatprep.subr.mxu0 %v66
    %119 = vmatpush1.msra.mxu0 %v65
    %120 = vmatprep.subr.mxu0 %v69
    %121 = vmatpush1.msra.mxu0 %v68
    %122 = vmatprep.subr.mxu0 %v72
    %123 = vmatpush1.msra.mxu0 %v71
    %124 = vmatprep.subr.mxu0 %v75
    %125 = vmatpush1.msra.mxu0 %v74
    %126 = vmatprep.subr.mxu0 0.0
    %127 = vmatpush1.msra.mxu0 0.0
    %128 = vmatprep.subr.mxu0 0.0
    %129 = vmatpush1.msra.mxu0 0.0
    %130 = vmatprep.subr.mxu0 0.0
    %131 = vmatpush1.msra.mxu0 0.0
    %132 = vmatprep.subr.mxu0 0.0
    %133 = vmatpush1.msra.mxu0 0.0
    %134 = vmatprep.subr.mxu0 0.0
    %135 = vmatpush1.msra.mxu0 0.0
    %136 = vmatprep.subr.mxu0 0.0
    %137 = vmatpush1.msra.mxu0 0.0
    %138 = vmatprep.subr.mxu0 0.0
    %139 = vmatpush1.msra.mxu0 0.0
    %140 = vmatprep.subr.mxu0 0.0
    %141 = vmatpush1.msra.mxu0 0.0
    %142 = vmatprep.subr.mxu0 0.0
    %143 = vmatpush1.msra.mxu0 0.0
    %144 = vmatprep.subr.mxu0 0.0
    %145 = vmatpush1.msra.mxu0 0.0
    %146 = vmatprep.subr.mxu0 0.0
    %147 = vmatpush1.msra.mxu0 0.0
    %148 = vmatprep.subr.mxu0 0.0
    %149 = vmatpush1.msra.mxu0 0.0
    %150 = vmatprep.subr.mxu0 0.0
    %151 = vmatpush1.msra.mxu0 0.0
    %152 = vmatprep.subr.mxu0 0.0
    %153 = vmatpush1.msra.mxu0 0.0
    %154 = vmatprep.subr.mxu0 0.0
    %155 = vmatpush1.msra.mxu0 0.0
    %156 = vmatprep.subr.mxu0 0.0
    %157 = vmatpush1.msra.mxu0 0.0
    %158 = vmatprep.mubr.f32.mxu0 0.0
    %159 = vmatmul.mubr.f32.gmra.mrb[0].mxu0 %v21
    %v160 = vpop.f32.mrb[0].mxu0
    %v161 = vadd.f32 %v82, %v160
    %v162 = vpop.f32.mrb[0].mxu0
    %v163 = vadd.f32 %v86, %v162
    %164 = vmatprep.mubr.f32.mxu0 0.0
    %165 = vmatmul.mubr.f32.gmra.mrb[0].mxu0 %v22
    %v166 = vpop.f32.mrb[0].mxu0
    %v167 = vadd.f32 %v82, %v166
    %v168 = vpop.f32.mrb[0].mxu0
    %v169 = vadd.f32 %v86, %v168
    %170 = vmatprep.mubr.f32.mxu0 0.0
    %171 = vmatmul.mubr.f32.gmra.mrb[0].mxu0 %v23
    %v172 = vpop.f32.mrb[0].mxu0
    %v173 = vadd.f32 %v82, %v172
    %v174 = vpop.f32.mrb[0].mxu0
    %v175 = vadd.f32 %v86, %v174
    %176 = vmatprep.mubr.f32.mxu0 0.0
    %177 = vmatmul.mubr.f32.gmra.mrb[0].mxu0 %v24
    %v178 = vpop.f32.mrb[0].mxu0
    %v179 = vadd.f32 %v82, %v178
    %v180 = vpop.f32.mrb[0].mxu0
    %v181 = vadd.f32 %v86, %v180
    %182 = vmatprep.mubr.f32.mxu0 0.0
    %183 = vmatmul.mubr.f32.gmra.mrb[0].mxu0 %v25
    %v184 = vpop.f32.mrb[0].mxu0
    %v185 = vadd.f32 %v82, %v184
    %v186 = vpop.f32.mrb[0].mxu0
    %v187 = vadd.f32 %v86, %v186
    %188 = vmatprep.mubr.f32.mxu0 0.0
    %189 = vmatmul.mubr.f32.gmra.mrb[0].mxu0 %v26
    %v190 = vpop.f32.mrb[0].mxu0
    %v191 = vadd.f32 %v82, %v190
    %v192 = vpop.f32.mrb[0].mxu0
    %v193 = vadd.f32 %v86, %v192
    %194 = vmatprep.mubr.f32.mxu0 0.0
    %195 = vmatmul.mubr.f32.gmra.mrb[0].mxu0 %v27
    %v196 = vpop.f32.mrb[0].mxu0
    %v197 = vadd.f32 %v82, %v196
    %v198 = vpop.f32.mrb[0].mxu0
    %v199 = vadd.f32 %v86, %v198
    %200 = vmatprep.mubr.f32.mxu0 0.0
    %201 = vmatmul.mubr.f32.gmra.mrb[0].mxu0 %v28
    %v202 = vpop.f32.mrb[0].mxu0
    %v203 = vadd.f32 %v82, %v202
    %v204 = vpop.f32.mrb[0].mxu0
    %v205 = vadd.f32 %v86, %v204
    %206 = vdwg.mxu0
    %207 = vmatprep.subr.mxu0 0.0
    %208 = vmatpush1.msra.mxu0 %v31
    %209 = vmatprep.subr.mxu0 0.0
    %210 = vmatpush1.msra.mxu0 %v34
    %211 = vmatprep.subr.mxu0 0.0
    %212 = vmatpush1.msra.mxu0 %v37
    %213 = vmatprep.subr.mxu0 0.0
    %214 = vmatpush1.msra.mxu0 %v40
    %215 = vmatprep.subr.mxu0 0.0
    %216 = vmatpush1.msra.mxu0 %v43
    %217 = vmatprep.subr.mxu0 0.0
    %218 = vmatpush1.msra.mxu0 %v46
    %219 = vmatprep.subr.mxu0 0.0
    %220 = vmatpush1.msra.mxu0 %v49
    %221 = vmatprep.subr.mxu0 0.0
    %222 = vmatpush1.msra.mxu0 %v52
    %223 = vmatprep.subr.mxu0 0.0
    %224 = vmatpush1.msra.mxu0 %v55
    %225 = vmatprep.subr.mxu0 0.0
    %226 = vmatpush1.msra.mxu0 %v58
    %227 = vmatprep.subr.mxu0 0.0
    %228 = vmatpush1.msra.mxu0 %v61
    %229 = vmatprep.subr.mxu0 0.0
    %230 = vmatpush1.msra.mxu0 %v64
    %231 = vmatprep.subr.mxu0 0.0
    %232 = vmatpush1.msra.mxu0 %v67
    %233 = vmatprep.subr.mxu0 0.0
    %234 = vmatpush1.msra.mxu0 %v70
    %235 = vmatprep.subr.mxu0 0.0
    %236 = vmatpush1.msra.mxu0 %v73
    %237 = vmatprep.subr.mxu0 0.0
    %238 = vmatpush1.msra.mxu0 %v76
    %239 = vmatprep.subr.mxu0 0.0
    %240 = vmatpush1.msra.mxu0 0.0
    %241 = vmatprep.subr.mxu0 0.0
    %242 = vmatpush1.msra.mxu0 0.0
    %243 = vmatprep.subr.mxu0 0.0
    %244 = vmatpush1.msra.mxu0 0.0
    %245 = vmatprep.subr.mxu0 0.0
    %246 = vmatpush1.msra.mxu0 0.0
    %247 = vmatprep.subr.mxu0 0.0
    %248 = vmatpush1.msra.mxu0 0.0
    %249 = vmatprep.subr.mxu0 0.0
    %250 = vmatpush1.msra.mxu0 0.0
    %251 = vmatprep.subr.mxu0 0.0
    %252 = vmatpush1.msra.mxu0 0.0
    %253 = vmatprep.subr.mxu0 0.0
    %254 = vmatpush1.msra.mxu0 0.0
    %255 = vmatprep.subr.mxu0 0.0
    %256 = vmatpush1.msra.mxu0 0.0
    %257 = vmatprep.subr.mxu0 0.0
    %258 = vmatpush1.msra.mxu0 0.0
    %259 = vmatprep.subr.mxu0 0.0
    %260 = vmatpush1.msra.mxu0 0.0
    %261 = vmatprep.subr.mxu0 0.0
    %262 = vmatpush1.msra.mxu0 0.0
    %263 = vmatprep.subr.mxu0 0.0
    %264 = vmatpush1.msra.mxu0 0.0
    %265 = vmatprep.subr.mxu0 0.0
    %266 = vmatpush1.msra.mxu0 0.0
    %267 = vmatprep.subr.mxu0 0.0
    %268 = vmatpush1.msra.mxu0 0.0
    %269 = vmatprep.subr.mxu0 0.0
    %270 = vmatpush1.msra.mxu0 0.0
    %271 = vmatprep.mubr.f32.mxu0 0.0
    %272 = vmatmul.mubr.f32.gmra.mrb[0].mxu0 %v21
    %v273 = vpop.f32.mrb[0].mxu0
    %v274 = vadd.f32 %v90, %v273
    %v275 = vpop.f32.mrb[0].mxu0
    %276 = vmatprep.mubr.f32.mxu0 0.0
    %277 = vmatmul.mubr.f32.gmra.mrb[0].mxu0 %v22
    %v278 = vpop.f32.mrb[0].mxu0
    %v279 = vadd.f32 %v90, %v278
    %v280 = vpop.f32.mrb[0].mxu0
    %281 = vmatprep.mubr.f32.mxu0 0.0
    %282 = vmatmul.mubr.f32.gmra.mrb[0].mxu0 %v23
    %v283 = vpop.f32.mrb[0].mxu0
    %v284 = vadd.f32 %v90, %v283
    %v285 = vpop.f32.mrb[0].mxu0
    %286 = vmatprep.mubr.f32.mxu0 0.0
    %287 = vmatmul.mubr.f32.gmra.mrb[0].mxu0 %v24
    %v288 = vpop.f32.mrb[0].mxu0
    %v289 = vadd.f32 %v90, %v288
    %v290 = vpop.f32.mrb[0].mxu0
    %291 = vmatprep.mubr.f32.mxu0 0.0
    %292 = vmatmul.mubr.f32.gmra.mrb[0].mxu0 %v25
    %v293 = vpop.f32.mrb[0].mxu0
    %v294 = vadd.f32 %v90, %v293
    %v295 = vpop.f32.mrb[0].mxu0
    %296 = vmatprep.mubr.f32.mxu0 0.0
    %297 = vmatmul.mubr.f32.gmra.mrb[0].mxu0 %v26
    %v298 = vpop.f32.mrb[0].mxu0
    %v299 = vadd.f32 %v90, %v298
    %v300 = vpop.f32.mrb[0].mxu0
    %301 = vmatprep.mubr.f32.mxu0 0.0
    %302 = vmatmul.mubr.f32.gmra.mrb[0].mxu0 %v27
    %v303 = vpop.f32.mrb[0].mxu0
    %v304 = vadd.f32 %v90, %v303
    %v305 = vpop.f32.mrb[0].mxu0
    %306 = vmatprep.mubr.f32.mxu0 0.0
    %307 = vmatmul.mubr.f32.gmra.mrb[0].mxu0 %v28
    %v308 = vpop.f32.mrb[0].mxu0
    %v309 = vadd.f32 %v90, %v308
    %v310 = vpop.f32.mrb[0].mxu0
    %311 = vdwg.mxu0
    %312 = vst [vmem:[#allocation2] sm:$0xff] %v161
    %313 = vst [vmem:[#allocation2 + $0x8] sm:$0xff] %v163
    %314 = vst [vmem:[#allocation2 + $0x10] sm:$0xff] %v274
    %315 = vst [vmem:[#allocation2 + $0x18] sm:$0xff] %v167
    %316 = vst [vmem:[#allocation2 + $0x20] sm:$0xff] %v169
    %317 = vst [vmem:[#allocation2 + $0x28] sm:$0xff] %v279
    %318 = vst [vmem:[#allocation2 + $0x30] sm:$0xff] %v173
    %319 = vst [vmem:[#allocation2 + $0x38] sm:$0xff] %v175
    %320 = vst [vmem:[#allocation2 + $0x40] sm:$0xff] %v284
    %321 = vst [vmem:[#allocation2 + $0x48] sm:$0xff] %v179
    %322 = vst [vmem:[#allocation2 + $0x50] sm:$0xff] %v181
    %323 = vst [vmem:[#allocation2 + $0x58] sm:$0xff] %v289
    %324 = vst [vmem:[#allocation2 + $0x60] sm:$0xff] %v185
    %325 = vst [vmem:[#allocation2 + $0x68] sm:$0xff] %v187
    %326 = vst [vmem:[#allocation2 + $0x70] sm:$0xff] %v294
    %327 = vst [vmem:[#allocation2 + $0x78] sm:$0xff] %v191
    %328 = vst [vmem:[#allocation2 + $0x80] sm:$0xff] %v193
    %329 = vst [vmem:[#allocation2 + $0x88] sm:$0xff] %v299
    %330 = vst [vmem:[#allocation2 + $0x90] sm:$0xff] %v197
    %331 = vst [vmem:[#allocation2 + $0x98] sm:$0xff] %v199
    %332 = vst [vmem:[#allocation2 + $0xa0] sm:$0xff] %v304
    %333 = vst [vmem:[#allocation2 + $0xa8] sm:$0xff] %v203
    %334 = vst [vmem:[#allocation2 + $0xb0] sm:$0xff] %v205
    %335 = vst [vmem:[#allocation2 + $0xb8] sm:$0xff] %v309
    %s336 = smul.u32 0, 3
    %s337 = smul.addr %s336, 8
    %s338 = scalar_lea.vmem [#allocation2], %s337
    %v339 = vld [vmem:[%s338] sm:$0xff]
    %v340 = vld [vmem:[%s338 + $0x8] sm:$0xff]
    %v341 = vld [vmem:[%s338 + $0x10] sm:$0xff]
    %v342 = vld [vmem:[%s2] sm:$0xff]
    %v343 = vld [vmem:[%s2 + $0x8] sm:$0xff]
    %v344 = vld [vmem:[%s2 + $0x10] sm:$0xff]
    %v345 = vld [vmem:[%s2 + $0x18] sm:$0xff]
    %v346 = vld [vmem:[%s2 + $0x20] sm:$0xff]
    %v347 = vld [vmem:[%s2 + $0x28] sm:$0xff]
    %v348 = vld [vmem:[%s2 + $0x30] sm:$0xff]
    %v349 = vld [vmem:[%s2 + $0x38] sm:$0xff]
    %v350 = vld [vmem:[%s2 + $0x40] sm:$0xff]
    %v351 = vld [vmem:[%s2 + $0x48] sm:$0xff]
    %v352 = vld [vmem:[%s2 + $0x50] sm:$0xff]
    %v353 = vld [vmem:[%s2 + $0x58] sm:$0xff]
    %v354 = vld [vmem:[%s2 + $0x60] sm:$0xff]
    %v355 = vld [vmem:[%s2 + $0x68] sm:$0xff]
    %v356 = vld [vmem:[%s2 + $0x70] sm:$0xff]
    %v357 = vld [vmem:[%s2 + $0x78] sm:$0xff]
    %v358 = vld [vmem:[%s2 + $0x80] sm:$0xff]
    %v359 = vld [vmem:[%s2 + $0x88] sm:$0xff]
    %v360 = vld [vmem:[%s2 + $0x90] sm:$0xff]
    %v361 = vld [vmem:[%s2 + $0x98] sm:$0xff]
    %v362 = vld [vmem:[%s2 + $0xa0] sm:$0xff]
    %v363 = vld [vmem:[%s2 + $0xa8] sm:$0xff]
    %v364 = vld [vmem:[%s2 + $0xb0] sm:$0xff]
    %v365 = vld [vmem:[%s2 + $0xb8] sm:$0xff]
    %v366 = vld [vmem:[%s2 + $0xc0] sm:$0xff]
    %v367 = vld [vmem:[%s2 + $0xc8] sm:$0xff]
    %v368 = vld [vmem:[%s2 + $0xd0] sm:$0xff]
    %v369 = vld [vmem:[%s2 + $0xd8] sm:$0xff]
    %v370 = vld [vmem:[%s2 + $0xe0] sm:$0xff]
    %v371 = vld [vmem:[%s2 + $0xe8] sm:$0xff]
    %v372 = vld [vmem:[%s2 + $0xf0] sm:$0xff]
    %v373 = vld [vmem:[%s2 + $0xf8] sm:$0xff]
    %374 = vmatprep.subr.mxu0 %v343
    %375 = vmatpush1.msra.mxu0 %v342
    %376 = vmatprep.subr.mxu0 %v345
    %377 = vmatpush1.msra.mxu0 %v344
    %378 = vmatprep.subr.mxu0 %v347
    %379 = vmatpush1.msra.mxu0 %v346
    %380 = vmatprep.subr.mxu0 %v349
    %381 = vmatpush1.msra.mxu0 %v348
    %382 = vmatprep.subr.mxu0 %v351
    %383 = vmatpush1.msra.mxu0 %v350
    %384 = vmatprep.subr.mxu0 %v353
    %385 = vmatpush1.msra.mxu0 %v352
    %386 = vmatprep.subr.mxu0 %v355
    %387 = vmatpush1.msra.mxu0 %v354
    %388 = vmatprep.subr.mxu0 %v357
    %389 = vmatpush1.msra.mxu0 %v356
    %390 = vmatprep.subr.mxu0 %v359
    %391 = vmatpush1.msra.mxu0 %v358
    %392 = vmatprep.subr.mxu0 %v361
    %393 = vmatpush1.msra.mxu0 %v360
    %394 = vmatprep.subr.mxu0 %v363
    %395 = vmatpush1.msra.mxu0 %v362
    %396 = vmatprep.subr.mxu0 %v365
    %397 = vmatpush1.msra.mxu0 %v364
    %398 = vmatprep.subr.mxu0 %v367
    %399 = vmatpush1.msra.mxu0 %v366
    %400 = vmatprep.subr.mxu0 %v369
    %401 = vmatpush1.msra.mxu0 %v368
    %402 = vmatprep.subr.mxu0 %v371
    %403 = vmatpush1.msra.mxu0 %v370
    %404 = vmatprep.subr.mxu0 %v373
    %405 = vmatpush1.msra.mxu0 %v372
    %406 = vmatprep.subr.mxu0 0.0
    %407 = vmatpush1.msra.mxu0 0.0
    %408 = vmatprep.subr.mxu0 0.0
    %409 = vmatpush1.msra.mxu0 0.0
    %410 = vmatprep.subr.mxu0 0.0
    %411 = vmatpush1.msra.mxu0 0.0
    %412 = vmatprep.subr.mxu0 0.0
    %413 = vmatpush1.msra.mxu0 0.0
    %414 = vmatprep.subr.mxu0 0.0
    %415 = vmatpush1.msra.mxu0 0.0
    %416 = vmatprep.subr.mxu0 0.0
    %417 = vmatpush1.msra.mxu0 0.0
    %418 = vmatprep.subr.mxu0 0.0
    %419 = vmatpush1.msra.mxu0 0.0
    %420 = vmatprep.subr.mxu0 0.0
    %421 = vmatpush1.msra.mxu0 0.0
    %422 = vmatprep.subr.mxu0 0.0
    %423 = vmatpush1.msra.mxu0 0.0
    %424 = vmatprep.subr.mxu0 0.0
    %425 = vmatpush1.msra.mxu0 0.0
    %426 = vmatprep.subr.mxu0 0.0
    %427 = vmatpush1.msra.mxu0 0.0
    %428 = vmatprep.subr.mxu0 0.0
    %429 = vmatpush1.msra.mxu0 0.0
    %430 = vmatprep.subr.mxu0 0.0
    %431 = vmatpush1.msra.mxu0 0.0
    %432 = vmatprep.subr.mxu0 0.0
    %433 = vmatpush1.msra.mxu0 0.0
    %434 = vmatprep.subr.mxu0 0.0
    %435 = vmatpush1.msra.mxu0 0.0
    %436 = vmatprep.subr.mxu0 0.0
    %437 = vmatpush1.msra.mxu0 0.0
    %438 = vmatprep.mubr.f32.mxu0 0.0
    %439 = vmatmul.mubr.f32.gmra.mrb[0].mxu0 0.0
    %v440 = vpop.f32.mrb[0].mxu0
    %v441 = vadd.f32 0.0, %v440
    %v442 = vpop.f32.mrb[0].mxu0
    %v443 = vadd.f32 0.0, %v442
    %444 = vdwg.mxu0
    %v445 = vadd.f32 %v339, %v441
    %v446 = vadd.f32 %v340, %v443
    %v447 = vxor.u32 %v445, 2147483648
    %v448 = vxor.u32 %v446, 2147483648
    %v449 = vmul.f32 %v447, 1.442695
    %v450 = vpow.pop %v449
    %v451 = vmul.f32 %v448, 1.442695
    %v452 = vpow.pop %v451
    %v453 = vadd.f32 %v450, 1.0
    %v454 = vadd.f32 %v452, 1.0
    %v455 = vrcp.pop %v453
    %v456 = vmul.f32 1.0, %v455
    %v457 = vrcp.pop %v454
    %v458 = vmul.f32 1.0, %v457
    %v459 = vmul.f32 %v458, 0.0
    %v460 = vld [vmem:[%s3] sm:$0xff]
    %v461 = vld [vmem:[%s3 + $0x8] sm:$0xff]
    %v462 = vld [vmem:[%s3 + $0x10] sm:$0xff]
    %v463 = vld [vmem:[%s3 + $0x18] sm:$0xff]
    %v464 = vld [vmem:[%s3 + $0x20] sm:$0xff]
    %v465 = vld [vmem:[%s3 + $0x28] sm:$0xff]
    %v466 = vld [vmem:[%s3 + $0x30] sm:$0xff]
    %v467 = vld [vmem:[%s3 + $0x38] sm:$0xff]
    %v468 = vld [vmem:[%s3 + $0x40] sm:$0xff]
    %v469 = vld [vmem:[%s3 + $0x48] sm:$0xff]
    %v470 = vld [vmem:[%s3 + $0x50] sm:$0xff]
    %v471 = vld [vmem:[%s3 + $0x58] sm:$0xff]
    %v472 = vld [vmem:[%s3 + $0x60] sm:$0xff]
    %v473 = vld [vmem:[%s3 + $0x68] sm:$0xff]
    %v474 = vld [vmem:[%s3 + $0x70] sm:$0xff]
    %v475 = vld [vmem:[%s3 + $0x78] sm:$0xff]
    %476 = vmatprep.subr.mxu0 0.0
    %477 = vmatpush1.msra.mxu0 %v460
    %478 = vmatprep.subr.mxu0 0.0
    %479 = vmatpush1.msra.mxu0 %v461
    %480 = vmatprep.subr.mxu0 0.0
    %481 = vmatpush1.msra.mxu0 %v462
    %482 = vmatprep.subr.mxu0 0.0
    %483 = vmatpush1.msra.mxu0 %v463
    %484 = vmatprep.subr.mxu0 0.0
    %485 = vmatpush1.msra.mxu0 %v464
    %486 = vmatprep.subr.mxu0 0.0
    %487 = vmatpush1.msra.mxu0 %v465
    %488 = vmatprep.subr.mxu0 0.0
    %489 = vmatpush1.msra.mxu0 %v466
    %490 = vmatprep.subr.mxu0 0.0
    %491 = vmatpush1.msra.mxu0 %v467
    %492 = vmatprep.subr.mxu0 0.0
    %493 = vmatpush1.msra.mxu0 %v468
    %494 = vmatprep.subr.mxu0 0.0
    %495 = vmatpush1.msra.mxu0 %v469
    %496 = vmatprep.subr.mxu0 0.0
    %497 = vmatpush1.msra.mxu0 %v470
    %498 = vmatprep.subr.mxu0 0.0
    %499 = vmatpush1.msra.mxu0 %v471
    %500 = vmatprep.subr.mxu0 0.0
    %501 = vmatpush1.msra.mxu0 %v472
    %502 = vmatprep.subr.mxu0 0.0
    %503 = vmatpush1.msra.mxu0 %v473
    %504 = vmatprep.subr.mxu0 0.0
    %505 = vmatpush1.msra.mxu0 %v474
    %506 = vmatprep.subr.mxu0 0.0
    %507 = vmatpush1.msra.mxu0 %v475
    %508 = vmatprep.subr.mxu0 0.0
    %509 = vmatpush1.msra.mxu0 0.0
    %510 = vmatprep.subr.mxu0 0.0
    %511 = vmatpush1.msra.mxu0 0.0
    %512 = vmatprep.subr.mxu0 0.0
    %513 = vmatpush1.msra.mxu0 0.0
    %514 = vmatprep.subr.mxu0 0.0
    %515 = vmatpush1.msra.mxu0 0.0
    %516 = vmatprep.subr.mxu0 0.0
    %517 = vmatpush1.msra.mxu0 0.0
    %518 = vmatprep.subr.mxu0 0.0
    %519 = vmatpush1.msra.mxu0 0.0
    %520 = vmatprep.subr.mxu0 0.0
    %521 = vmatpush1.msra.mxu0 0.0
    %522 = vmatprep.subr.mxu0 0.0
    %523 = vmatpush1.msra.mxu0 0.0
    %524 = vmatprep.subr.mxu0 0.0
    %525 = vmatpush1.msra.mxu0 0.0
    %526 = vmatprep.subr.mxu0 0.0
    %527 = vmatpush1.msra.mxu0 0.0
    %528 = vmatprep.subr.mxu0 0.0
    %529 = vmatpush1.msra.mxu0 0.0
    %530 = vmatprep.subr.mxu0 0.0
    %531 = vmatpush1.msra.mxu0 0.0
    %532 = vmatprep.subr.mxu0 0.0
    %533 = vmatpush1.msra.mxu0 0.0
    %534 = vmatprep.subr.mxu0 0.0
    %535 = vmatpush1.msra.mxu0 0.0
    %536 = vmatprep.subr.mxu0 0.0
    %537 = vmatpush1.msra.mxu0 0.0
    %538 = vmatprep.subr.mxu0 0.0
    %539 = vmatpush1.msra.mxu0 0.0
    %540 = vmatprep.mubr.f32.mxu0 0.0
    %541 = vmatmul.mubr.f32.gmra.mrb[0].mxu0 %v459
    %v542 = vpop.f32.mrb[0].mxu0
    %v543 = vadd.f32 0.0, %v542
    %v544 = vpop.f32.mrb[0].mxu0
    %545 = vdwg.mxu0
    %v546 = vadd.f32 %v341, %v543
    %v547 = vtanh.pop %v546
    %v548 = vmul.f32 %v456, %v547
    %v549 = vadd.f32 %v548, 0.0
    %s550 = smul.u32 1, 3
    %s551 = smul.addr %s550, 8
    %s552 = scalar_lea.vmem [#allocation2], %s551
    %v553 = vld [vmem:[%s552] sm:$0xff]
    %v554 = vld [vmem:[%s552 + $0x8] sm:$0xff]
    %v555 = vld [vmem:[%s552 + $0x10] sm:$0xff]
    %556 = vmatprep.subr.mxu0 %v343
    %557 = vmatpush1.msra.mxu0 %v342
    %558 = vmatprep.subr.mxu0 %v345
    %559 = vmatpush1.msra.mxu0 %v344
    %560 = vmatprep.subr.mxu0 %v347
    %561 = vmatpush1.msra.mxu0 %v346
    %562 = vmatprep.subr.mxu0 %v349
    %563 = vmatpush1.msra.mxu0 %v348
    %564 = vmatprep.subr.mxu0 %v351
    %565 = vmatpush1.msra.mxu0 %v350
    %566 = vmatprep.subr.mxu0 %v353
    %567 = vmatpush1.msra.mxu0 %v352
    %568 = vmatprep.subr.mxu0 %v355
    %569 = vmatpush1.msra.mxu0 %v354
    %570 = vmatprep.subr.mxu0 %v357
    %571 = vmatpush1.msra.mxu0 %v356
    %572 = vmatprep.subr.mxu0 %v359
    %573 = vmatpush1.msra.mxu0 %v358
    %574 = vmatprep.subr.mxu0 %v361
    %575 = vmatpush1.msra.mxu0 %v360
    %576 = vmatprep.subr.mxu0 %v363
    %577 = vmatpush1.msra.mxu0 %v362
    %578 = vmatprep.subr.mxu0 %v365
    %579 = vmatpush1.msra.mxu0 %v364
    %580 = vmatprep.subr.mxu0 %v367
    %581 = vmatpush1.msra.mxu0 %v366
    %582 = vmatprep.subr.mxu0 %v369
    %583 = vmatpush1.msra.mxu0 %v368
    %584 = vmatprep.subr.mxu0 %v371
    %585 = vmatpush1.msra.mxu0 %v370
    %586 = vmatprep.subr.mxu0 %v373
    %587 = vmatpush1.msra.mxu0 %v372
    %588 = vmatprep.subr.mxu0 0.0
    %589 = vmatpush1.msra.mxu0 0.0
    %590 = vmatprep.subr.mxu0 0.0
    %591 = vmatpush1.msra.mxu0 0.0
    %592 = vmatprep.subr.mxu0 0.0
    %593 = vmatpush1.msra.mxu0 0.0
    %594 = vmatprep.subr.mxu0 0.0
    %595 = vmatpush1.msra.mxu0 0.0
    %596 = vmatprep.subr.mxu0 0.0
    %597 = vmatpush1.msra.mxu0 0.0
    %598 = vmatprep.subr.mxu0 0.0
    %599 = vmatpush1.msra.mxu0 0.0
    %600 = vmatprep.subr.mxu0 0.0
    %601 = vmatpush1.msra.mxu0 0.0
    %602 = vmatprep.subr.mxu0 0.0
    %603 = vmatpush1.msra.mxu0 0.0
    %604 = vmatprep.subr.mxu0 0.0
    %605 = vmatpush1.msra.mxu0 0.0
    %606 = vmatprep.subr.mxu0 0.0
    %607 = vmatpush1.msra.mxu0 0.0
    %608 = vmatprep.subr.mxu0 0.0
    %609 = vmatpush1.msra.mxu0 0.0
    %610 = vmatprep.subr.mxu0 0.0
    %611 = vmatpush1.msra.mxu0 0.0
    %612 = vmatprep.subr.mxu0 0.0
    %613 = vmatpush1.msra.mxu0 0.0
    %614 = vmatprep.subr.mxu0 0.0
    %615 = vmatpush1.msra.mxu0 0.0
    %616 = vmatprep.subr.mxu0 0.0
    %617 = vmatpush1.msra.mxu0 0.0
    %618 = vmatprep.subr.mxu0 0.0
    %619 = vmatpush1.msra.mxu0 0.0
    %620 = vmatprep.mubr.f32.mxu0 0.0
    %621 = vmatmul.mubr.f32.gmra.mrb[0].mxu0 %v549
    %v622 = vpop.f32.mrb[0].mxu0
    %v623 = vadd.f32 0.0, %v622
    %v624 = vpop.f32.mrb[0].mxu0
    %v625 = vadd.f32 0.0, %v624
    %626 = vdwg.mxu0
    %v627 = vadd.f32 %v553, %v623
    %v628 = vadd.f32 %v554, %v625
    %v629 = vxor.u32 %v627, 2147483648
    %v630 = vxor.u32 %v628, 2147483648
    %v631 = vmul.f32 %v629, 1.442695
    %v632 = vpow.pop %v631
    %v633 = vmul.f32 %v630, 1.442695
    %v634 = vpow.pop %v633
    %v635 = vadd.f32 %v632, 1.0
    %v636 = vadd.f32 %v634, 1.0
    %v637 = vrcp.pop %v635
    %v638 = vmul.f32 1.0, %v637
    %v639 = vrcp.pop %v636
    %v640 = vmul.f32 1.0, %v639
    %v641 = vmul.f32 %v640, %v549
    %642 = vmatprep.subr.mxu0 0.0
    %643 = vmatpush1.msra.mxu0 %v460
    %644 = vmatprep.subr.mxu0 0.0
    %645 = vmatpush1.msra.mxu0 %v461
    %646 = vmatprep.subr.mxu0 0.0
    %647 = vmatpush1.msra.mxu0 %v462
    %648 = vmatprep.subr.mxu0 0.0
    %649 = vmatpush1.msra.mxu0 %v463
    %650 = vmatprep.subr.mxu0 0.0
    %651 = vmatpush1.msra.mxu0 %v464
    %652 = vmatprep.subr.mxu0 0.0
    %653 = vmatpush1.msra.mxu0 %v465
    %654 = vmatprep.subr.mxu0 0.0
    %655 = vmatpush1.msra.mxu0 %v466
    %656 = vmatprep.subr.mxu0 0.0
    %657 = vmatpush1.msra.mxu0 %v467
    %658 = vmatprep.subr.mxu0 0.0
    %659 = vmatpush1.msra.mxu0 %v468
    %660 = vmatprep.subr.mxu0 0.0
    %661 = vmatpush1.msra.mxu0 %v469
    %662 = vmatprep.subr.mxu0 0.0
    %663 = vmatpush1.msra.mxu0 %v470
    %664 = vmatprep.subr.mxu0 0.0
    %665 = vmatpush1.msra.mxu0 %v471
    %666 = vmatprep.subr.mxu0 0.0
    %667 = vmatpush1.msra.mxu0 %v472
    %668 = vmatprep.subr.mxu0 0.0
    %669 = vmatpush1.msra.mxu0 %v473
    %670 = vmatprep.subr.mxu0 0.0
    %671 = vmatpush1.msra.mxu0 %v474
    %672 = vmatprep.subr.mxu0 0.0
    %673 = vmatpush1.msra.mxu0 %v475
    %674 = vmatprep.subr.mxu0 0.0
    %675 = vmatpush1.msra.mxu0 0.0
    %676 = vmatprep.subr.mxu0 0.0
    %677 = vmatpush1.msra.mxu0 0.0
    %678 = vmatprep.subr.mxu0 0.0
    %679 = vmatpush1.msra.mxu0 0.0
    %680 = vmatprep.subr.mxu0 0.0
    %681 = vmatpush1.msra.mxu0 0.0
    %682 = vmatprep.subr.mxu0 0.0
    %683 = vmatpush1.msra.mxu0 0.0
    %684 = vmatprep.subr.mxu0 0.0
    %685 = vmatpush1.msra.mxu0 0.0
    %686 = vmatprep.subr.mxu0 0.0
    %687 = vmatpush1.msra.mxu0 0.0
    %688 = vmatprep.subr.mxu0 0.0
    %689 = vmatpush1.msra.mxu0 0.0
    %690 = vmatprep.subr.mxu0 0.0
    %691 = vmatpush1.msra.mxu0 0.0
    %692 = vmatprep.subr.mxu0 0.0
    %693 = vmatpush1.msra.mxu0 0.0
    %694 = vmatprep.subr.mxu0 0.0
    %695 = vmatpush1.msra.mxu0 0.0
    %696 = vmatprep.subr.mxu0 0.0
    %697 = vmatpush1.msra.mxu0 0.0
    %698 = vmatprep.subr.mxu0 0.0
    %699 = vmatpush1.msra.mxu0 0.0
    %700 = vmatprep.subr.mxu0 0.0
    %701 = vmatpush1.msra.mxu0 0.0
    %702 = vmatprep.subr.mxu0 0.0
    %703 = vmatpush1.msra.mxu0 0.0
    %704 = vmatprep.subr.mxu0 0.0
    %705 = vmatpush1.msra.mxu0 0.0
    %706 = vmatprep.mubr.f32.mxu0 0.0
    %707 = vmatmul.mubr.f32.gmra.mrb[0].mxu0 %v641
    %v708 = vpop.f32.mrb[0].mxu0
    %v709 = vadd.f32 0.0, %v708
    %v710 = vpop.f32.mrb[0].mxu0
    %711 = vdwg.mxu0
    %v712 = vadd.f32 %v555, %v709
    %v713 = vtanh.pop %v712
    %v714 = vsub.f32 %v713, %v549
    %v715 = vmul.f32 %v638, %v714
    %v716 = vadd.f32 %v549, %v715
    %s717 = smul.u32 2, 3
    %s718 = smul.addr %s717, 8
    %s719 = scalar_lea.vmem [#allocation2], %s718
    %v720 = vld [vmem:[%s719] sm:$0xff]
    %v721 = vld [vmem:[%s719 + $0x8] sm:$0xff]
    %v722 = vld [vmem:[%s719 + $0x10] sm:$0xff]
    %723 = vmatprep.subr.mxu0 %v343
    %724 = vmatpush1.msra.mxu0 %v342
    %725 = vmatprep.subr.mxu0 %v345
    %726 = vmatpush1.msra.mxu0 %v344
    %727 = vmatprep.subr.mxu0 %v347
    %728 = vmatpush1.msra.mxu0 %v346
    %729 = vmatprep.subr.mxu0 %v349
    %730 = vmatpush1.msra.mxu0 %v348
    %731 = vmatprep.subr.mxu0 %v351
    %732 = vmatpush1.msra.mxu0 %v350
    %733 = vmatprep.subr.mxu0 %v353
    %734 = vmatpush1.msra.mxu0 %v352
    %735 = vmatprep.subr.mxu0 %v355
    %736 = vmatpush1.msra.mxu0 %v354
    %737 = vmatprep.subr.mxu0 %v357
    %738 = vmatpush1.msra.mxu0 %v356
    %739 = vmatprep.subr.mxu0 %v359
    %740 = vmatpush1.msra.mxu0 %v358
    %741 = vmatprep.subr.mxu0 %v361
    %742 = vmatpush1.msra.mxu0 %v360
    %743 = vmatprep.subr.mxu0 %v363
    %744 = vmatpush1.msra.mxu0 %v362
    %745 = vmatprep.subr.mxu0 %v365
    %746 = vmatpush1.msra.mxu0 %v364
    %747 = vmatprep.subr.mxu0 %v367
    %748 = vmatpush1.msra.mxu0 %v366
    %749 = vmatprep.subr.mxu0 %v369
    %750 = vmatpush1.msra.mxu0 %v368
    %751 = vmatprep.subr.mxu0 %v371
    %752 = vmatpush1.msra.mxu0 %v370
    %753 = vmatprep.subr.mxu0 %v373
    %754 = vmatpush1.msra.mxu0 %v372
    %755 = vmatprep.subr.mxu0 0.0
    %756 = vmatpush1.msra.mxu0 0.0
    %757 = vmatprep.subr.mxu0 0.0
    %758 = vmatpush1.msra.mxu0 0.0
    %759 = vmatprep.subr.mxu0 0.0
    %760 = vmatpush1.msra.mxu0 0.0
    %761 = vmatprep.subr.mxu0 0.0
    %762 = vmatpush1.msra.mxu0 0.0
    %763 = vmatprep.subr.mxu0 0.0
    %764 = vmatpush1.msra.mxu0 0.0
    %765 = vmatprep.subr.mxu0 0.0
    %766 = vmatpush1.msra.mxu0 0.0
    %767 = vmatprep.subr.mxu0 0.0
    %768 = vmatpush1.msra.mxu0 0.0
    %769 = vmatprep.subr.mxu0 0.0
    %770 = vmatpush1.msra.mxu0 0.0
    %771 = vmatprep.subr.mxu0 0.0
    %772 = vmatpush1.msra.mxu0 0.0
    %773 = vmatprep.subr.mxu0 0.0
    %774 = vmatpush1.msra.mxu0 0.0
    %775 = vmatprep.subr.mxu0 0.0
    %776 = vmatpush1.msra.mxu0 0.0
    %777 = vmatprep.subr.mxu0 0.0
    %778 = vmatpush1.msra.mxu0 0.0
    %779 = vmatprep.subr.mxu0 0.0
    %780 = vmatpush1.msra.mxu0 0.0
    %781 = vmatprep.subr.mxu0 0.0
    %782 = vmatpush1.msra.mxu0 0.0
    %783 = vmatprep.subr.mxu0 0.0
    %784 = vmatpush1.msra.mxu0 0.0
    %785 = vmatprep.subr.mxu0 0.0
    %786 = vmatpush1.msra.mxu0 0.0
    %787 = vmatprep.mubr.f32.mxu0 0.0
    %788 = vmatmul.mubr.f32.gmra.mrb[0].mxu0 %v716
    %v789 = vpop.f32.mrb[0].mxu0
    %v790 = vadd.f32 0.0, %v789
    %v791 = vpop.f32.mrb[0].mxu0
    %v792 = vadd.f32 0.0, %v791
    %793 = vdwg.mxu0
    %v794 = vadd.f32 %v720, %v790
    %v795 = vadd.f32 %v721, %v792
    %v796 = vxor.u32 %v794, 2147483648
    %v797 = vxor.u32 %v795, 2147483648
    %v798 = vmul.f32 %v796, 1.442695
    %v799 = vpow.pop %v798
    %v800 = vmul.f32 %v797, 1.442695
    %v801 = vpow.pop %v800
    %v802 = vadd.f32 %v799, 1.0
    %v803 = vadd.f32 %v801, 1.0
    %v804 = vrcp.pop %v802
    %v805 = vmul.f32 1.0, %v804
    %v806 = vrcp.pop %v803
    %v807 = vmul.f32 1.0, %v806
    %v808 = vmul.f32 %v807, %v716
    %809 = vmatprep.subr.mxu0 0.0
    %810 = vmatpush1.msra.mxu0 %v460
    %811 = vmatprep.subr.mxu0 0.0
    %812 = vmatpush1.msra.mxu0 %v461
    %813 = vmatprep.subr.mxu0 0.0
    %814 = vmatpush1.msra.mxu0 %v462
    %815 = vmatprep.subr.mxu0 0.0
    %816 = vmatpush1.msra.mxu0 %v463
    %817 = vmatprep.subr.mxu0 0.0
    %818 = vmatpush1.msra.mxu0 %v464
    %819 = vmatprep.subr.mxu0 0.0
    %820 = vmatpush1.msra.mxu0 %v465
    %821 = vmatprep.subr.mxu0 0.0
    %822 = vmatpush1.msra.mxu0 %v466
    %823 = vmatprep.subr.mxu0 0.0
    %824 = vmatpush1.msra.mxu0 %v467
    %825 = vmatprep.subr.mxu0 0.0
    %826 = vmatpush1.msra.mxu0 %v468
    %827 = vmatprep.subr.mxu0 0.0
    %828 = vmatpush1.msra.mxu0 %v469
    %829 = vmatprep.subr.mxu0 0.0
    %830 = vmatpush1.msra.mxu0 %v470
    %831 = vmatprep.subr.mxu0 0.0
    %832 = vmatpush1.msra.mxu0 %v471
    %833 = vmatprep.subr.mxu0 0.0
    %834 = vmatpush1.msra.mxu0 %v472
    %835 = vmatprep.subr.mxu0 0.0
    %836 = vmatpush1.msra.mxu0 %v473
    %837 = vmatprep.subr.mxu0 0.0
    %838 = vmatpush1.msra.mxu0 %v474
    %839 = vmatprep.subr.mxu0 0.0
    %840 = vmatpush1.msra.mxu0 %v475
    %841 = vmatprep.subr.mxu0 0.0
    %842 = vmatpush1.msra.mxu0 0.0
    %843 = vmatprep.subr.mxu0 0.0
    %844 = vmatpush1.msra.mxu0 0.0
    %845 = vmatprep.subr.mxu0 0.0
    %846 = vmatpush1.msra.mxu0 0.0
    %847 = vmatprep.subr.mxu0 0.0
    %848 = vmatpush1.msra.mxu0 0.0
    %849 = vmatprep.subr.mxu0 0.0
    %850 = vmatpush1.msra.mxu0 0.0
    %851 = vmatprep.subr.mxu0 0.0
    %852 = vmatpush1.msra.mxu0 0.0
    %853 = vmatprep.subr.mxu0 0.0
    %854 = vmatpush1.msra.mxu0 0.0
    %855 = vmatprep.subr.mxu0 0.0
    %856 = vmatpush1.msra.mxu0 0.0
    %857 = vmatprep.subr.mxu0 0.0
    %858 = vmatpush1.msra.mxu0 0.0
    %859 = vmatprep.subr.mxu0 0.0
    %860 = vmatpush1.msra.mxu0 0.0
    %861 = vmatprep.subr.mxu0 0.0
    %862 = vmatpush1.msra.mxu0 0.0
    %863 = vmatprep.subr.mxu0 0.0
    %864 = vmatpush1.msra.mxu0 0.0
    %865 = vmatprep.subr.mxu0 0.0
    %866 = vmatpush1.msra.mxu0 0.0
    %867 = vmatprep.subr.mxu0 0.0
    %868 = vmatpush1.msra.mxu0 0.0
    %869 = vmatprep.subr.mxu0 0.0
    %870 = vmatpush1.msra.mxu0 0.0
    %871 = vmatprep.subr.mxu0 0.0
    %872 = vmatpush1.msra.mxu0 0.0
    %873 = vmatprep.mubr.f32.mxu0 0.0
    %874 = vmatmul.mubr.f32.gmra.mrb[0].mxu0 %v808
    %v875 = vpop.f32.mrb[0].mxu0
    %v876 = vadd.f32 0.0, %v875
    %v877 = vpop.f32.mrb[0].mxu0
    %878 = vdwg.mxu0
    %v879 = vadd.f32 %v722, %v876
    %v880 = vtanh.pop %v879
    %v881 = vsub.f32 %v880, %v716
    %v882 = vmul.f32 %v805, %v881
    %v883 = vadd.f32 %v716, %v882
    %s884 = smul.u32 3, 3
    %s885 = smul.addr %s884, 8
    %s886 = scalar_lea.vmem [#allocation2], %s885
    %v887 = vld [vmem:[%s886] sm:$0xff]
    %v888 = vld [vmem:[%s886 + $0x8] sm:$0xff]
    %v889 = vld [vmem:[%s886 + $0x10] sm:$0xff]
    %890 = vmatprep.subr.mxu0 %v343
    %891 = vmatpush1.msra.mxu0 %v342
    %892 = vmatprep.subr.mxu0 %v345
    %893 = vmatpush1.msra.mxu0 %v344
    %894 = vmatprep.subr.mxu0 %v347
    %895 = vmatpush1.msra.mxu0 %v346
    %896 = vmatprep.subr.mxu0 %v349
    %897 = vmatpush1.msra.mxu0 %v348
    %898 = vmatprep.subr.mxu0 %v351
    %899 = vmatpush1.msra.mxu0 %v350
    %900 = vmatprep.subr.mxu0 %v353
    %901 = vmatpush1.msra.mxu0 %v352
    %902 = vmatprep.subr.mxu0 %v355
    %903 = vmatpush1.msra.mxu0 %v354
    %904 = vmatprep.subr.mxu0 %v357
    %905 = vmatpush1.msra.mxu0 %v356
    %906 = vmatprep.subr.mxu0 %v359
    %907 = vmatpush1.msra.mxu0 %v358
    %908 = vmatprep.subr.mxu0 %v361
    %909 = vmatpush1.msra.mxu0 %v360
    %910 = vmatprep.subr.mxu0 %v363
    %911 = vmatpush1.msra.mxu0 %v362
    %912 = vmatprep.subr.mxu0 %v365
    %913 = vmatpush1.msra.mxu0 %v364
    %914 = vmatprep.subr.mxu0 %v367
    %915 = vmatpush1.msra.mxu0 %v366
    %916 = vmatprep.subr.mxu0 %v369
    %917 = vmatpush1.msra.mxu0 %v368
    %918 = vmatprep.subr.mxu0 %v371
    %919 = vmatpush1.msra.mxu0 %v370
    %920 = vmatprep.subr.mxu0 %v373
    %921 = vmatpush1.msra.mxu0 %v372
    %922 = vmatprep.subr.mxu0 0.0
    %923 = vmatpush1.msra.mxu0 0.0
    %924 = vmatprep.subr.mxu0 0.0
    %925 = vmatpush1.msra.mxu0 0.0
    %926 = vmatprep.subr.mxu0 0.0
    %927 = vmatpush1.msra.mxu0 0.0
    %928 = vmatprep.subr.mxu0 0.0
    %929 = vmatpush1.msra.mxu0 0.0
    %930 = vmatprep.subr.mxu0 0.0
    %931 = vmatpush1.msra.mxu0 0.0
    %932 = vmatprep.subr.mxu0 0.0
    %933 = vmatpush1.msra.mxu0 0.0
    %934 = vmatprep.subr.mxu0 0.0
    %935 = vmatpush1.msra.mxu0 0.0
    %936 = vmatprep.subr.mxu0 0.0
    %937 = vmatpush1.msra.mxu0 0.0
    %938 = vmatprep.subr.mxu0 0.0
    %939 = vmatpush1.msra.mxu0 0.0
    %940 = vmatprep.subr.mxu0 0.0
    %941 = vmatpush1.msra.mxu0 0.0
    %942 = vmatprep.subr.mxu0 0.0
    %943 = vmatpush1.msra.mxu0 0.0
    %944 = vmatprep.subr.mxu0 0.0
    %945 = vmatpush1.msra.mxu0 0.0
    %946 = vmatprep.subr.mxu0 0.0
    %947 = vmatpush1.msra.mxu0 0.0
    %948 = vmatprep.subr.mxu0 0.0
    %949 = vmatpush1.msra.mxu0 0.0
    %950 = vmatprep.subr.mxu0 0.0
    %951 = vmatpush1.msra.mxu0 0.0
    %952 = vmatprep.subr.mxu0 0.0
    %953 = vmatpush1.msra.mxu0 0.0
    %954 = vmatprep.mubr.f32.mxu0 0.0
    %955 = vmatmul.mubr.f32.gmra.mrb[0].mxu0 %v883
    %v956 = vpop.f32.mrb[0].mxu0
    %v957 = vadd.f32 0.0, %v956
    %v958 = vpop.f32.mrb[0].mxu0
    %v959 = vadd.f32 0.0, %v958
    %960 = vdwg.mxu0
    %v961 = vadd.f32 %v887, %v957
    %v962 = vadd.f32 %v888, %v959
    %v963 = vxor.u32 %v961, 2147483648
    %v964 = vxor.u32 %v962, 2147483648
    %v965 = vmul.f32 %v963, 1.442695
    %v966 = vpow.pop %v965
    %v967 = vmul.f32 %v964, 1.442695
    %v968 = vpow.pop %v967
    %v969 = vadd.f32 %v966, 1.0
    %v970 = vadd.f32 %v968, 1.0
    %v971 = vrcp.pop %v969
    %v972 = vmul.f32 1.0, %v971
    %v973 = vrcp.pop %v970
    %v974 = vmul.f32 1.0, %v973
    %v975 = vmul.f32 %v974, %v883
    %976 = vmatprep.subr.mxu0 0.0
    %977 = vmatpush1.msra.mxu0 %v460
    %978 = vmatprep.subr.mxu0 0.0
    %979 = vmatpush1.msra.mxu0 %v461
    %980 = vmatprep.subr.mxu0 0.0
    %981 = vmatpush1.msra.mxu0 %v462
    %982 = vmatprep.subr.mxu0 0.0
    %983 = vmatpush1.msra.mxu0 %v463
    %984 = vmatprep.subr.mxu0 0.0
    %985 = vmatpush1.msra.mxu0 %v464
    %986 = vmatprep.subr.mxu0 0.0
    %987 = vmatpush1.msra.mxu0 %v465
    %988 = vmatprep.subr.mxu0 0.0
    %989 = vmatpush1.msra.mxu0 %v466
    %990 = vmatprep.subr.mxu0 0.0
    %991 = vmatpush1.msra.mxu0 %v467
    %992 = vmatprep.subr.mxu0 0.0
    %993 = vmatpush1.msra.mxu0 %v468
    %994 = vmatprep.subr.mxu0 0.0
    %995 = vmatpush1.msra.mxu0 %v469
    %996 = vmatprep.subr.mxu0 0.0
    %997 = vmatpush1.msra.mxu0 %v470
    %998 = vmatprep.subr.mxu0 0.0
    %999 = vmatpush1.msra.mxu0 %v471
    %1000 = vmatprep.subr.mxu0 0.0
    %1001 = vmatpush1.msra.mxu0 %v472
    %1002 = vmatprep.subr.mxu0 0.0
    %1003 = vmatpush1.msra.mxu0 %v473
    %1004 = vmatprep.subr.mxu0 0.0
    %1005 = vmatpush1.msra.mxu0 %v474
    %1006 = vmatprep.subr.mxu0 0.0
    %1007 = vmatpush1.msra.mxu0 %v475
    %1008 = vmatprep.subr.mxu0 0.0
    %1009 = vmatpush1.msra.mxu0 0.0
    %1010 = vmatprep.subr.mxu0 0.0
    %1011 = vmatpush1.msra.mxu0 0.0
    %1012 = vmatprep.subr.mxu0 0.0
    %1013 = vmatpush1.msra.mxu0 0.0
    %1014 = vmatprep.subr.mxu0 0.0
    %1015 = vmatpush1.msra.mxu0 0.0
    %1016 = vmatprep.subr.mxu0 0.0
    %1017 = vmatpush1.msra.mxu0 0.0
    %1018 = vmatprep.subr.mxu0 0.0
    %1019 = vmatpush1.msra.mxu0 0.0
    %1020 = vmatprep.subr.mxu0 0.0
    %1021 = vmatpush1.msra.mxu0 0.0
    %1022 = vmatprep.subr.mxu0 0.0
    %1023 = vmatpush1.msra.mxu0 0.0
    %1024 = vmatprep.subr.mxu0 0.0
    %1025 = vmatpush1.msra.mxu0 0.0
    %1026 = vmatprep.subr.mxu0 0.0
    %1027 = vmatpush1.msra.mxu0 0.0
    %1028 = vmatprep.subr.mxu0 0.0
    %1029 = vmatpush1.msra.mxu0 0.0
    %1030 = vmatprep.subr.mxu0 0.0
    %1031 = vmatpush1.msra.mxu0 0.0
    %1032 = vmatprep.subr.mxu0 0.0
    %1033 = vmatpush1.msra.mxu0 0.0
    %1034 = vmatprep.subr.mxu0 0.0
    %1035 = vmatpush1.msra.mxu0 0.0
    %1036 = vmatprep.subr.mxu0 0.0
    %1037 = vmatpush1.msra.mxu0 0.0
    %1038 = vmatprep.subr.mxu0 0.0
    %1039 = vmatpush1.msra.mxu0 0.0
    %1040 = vmatprep.mubr.f32.mxu0 0.0
    %1041 = vmatmul.mubr.f32.gmra.mrb[0].mxu0 %v975
    %v1042 = vpop.f32.mrb[0].mxu0
    %v1043 = vadd.f32 0.0, %v1042
    %v1044 = vpop.f32.mrb[0].mxu0
    %1045 = vdwg.mxu0
    %v1046 = vadd.f32 %v889, %v1043
    %v1047 = vtanh.pop %v1046
    %v1048 = vsub.f32 %v1047, %v883
    %v1049 = vmul.f32 %v972, %v1048
    %v1050 = vadd.f32 %v883, %v1049
    %s1051 = smul.u32 4, 3
    %s1052 = smul.addr %s1051, 8
    %s1053 = scalar_lea.vmem [#allocation2], %s1052
    %v1054 = vld [vmem:[%s1053] sm:$0xff]
    %v1055 = vld [vmem:[%s1053 + $0x8] sm:$0xff]
    %v1056 = vld [vmem:[%s1053 + $0x10] sm:$0xff]
    %1057 = vmatprep.subr.mxu0 %v343
    %1058 = vmatpush1.msra.mxu0 %v342
    %1059 = vmatprep.subr.mxu0 %v345
    %1060 = vmatpush1.msra.mxu0 %v344
    %1061 = vmatprep.subr.mxu0 %v347
    %1062 = vmatpush1.msra.mxu0 %v346
    %1063 = vmatprep.subr.mxu0 %v349
    %1064 = vmatpush1.msra.mxu0 %v348
    %1065 = vmatprep.subr.mxu0 %v351
    %1066 = vmatpush1.msra.mxu0 %v350
    %1067 = vmatprep.subr.mxu0 %v353
    %1068 = vmatpush1.msra.mxu0 %v352
    %1069 = vmatprep.subr.mxu0 %v355
    %1070 = vmatpush1.msra.mxu0 %v354
    %1071 = vmatprep.subr.mxu0 %v357
    %1072 = vmatpush1.msra.mxu0 %v356
    %1073 = vmatprep.subr.mxu0 %v359
    %1074 = vmatpush1.msra.mxu0 %v358
    %1075 = vmatprep.subr.mxu0 %v361
    %1076 = vmatpush1.msra.mxu0 %v360
    %1077 = vmatprep.subr.mxu0 %v363
    %1078 = vmatpush1.msra.mxu0 %v362
    %1079 = vmatprep.subr.mxu0 %v365
    %1080 = vmatpush1.msra.mxu0 %v364
    %1081 = vmatprep.subr.mxu0 %v367
    %1082 = vmatpush1.msra.mxu0 %v366
    %1083 = vmatprep.subr.mxu0 %v369
    %1084 = vmatpush1.msra.mxu0 %v368
    %1085 = vmatprep.subr.mxu0 %v371
    %1086 = vmatpush1.msra.mxu0 %v370
    %1087 = vmatprep.subr.mxu0 %v373
    %1088 = vmatpush1.msra.mxu0 %v372
    %1089 = vmatprep.subr.mxu0 0.0
    %1090 = vmatpush1.msra.mxu0 0.0
    %1091 = vmatprep.subr.mxu0 0.0
    %1092 = vmatpush1.msra.mxu0 0.0
    %1093 = vmatprep.subr.mxu0 0.0
    %1094 = vmatpush1.msra.mxu0 0.0
    %1095 = vmatprep.subr.mxu0 0.0
    %1096 = vmatpush1.msra.mxu0 0.0
    %1097 = vmatprep.subr.mxu0 0.0
    %1098 = vmatpush1.msra.mxu0 0.0
    %1099 = vmatprep.subr.mxu0 0.0
    %1100 = vmatpush1.msra.mxu0 0.0
    %1101 = vmatprep.subr.mxu0 0.0
    %1102 = vmatpush1.msra.mxu0 0.0
    %1103 = vmatprep.subr.mxu0 0.0
    %1104 = vmatpush1.msra.mxu0 0.0
    %1105 = vmatprep.subr.mxu0 0.0
    %1106 = vmatpush1.msra.mxu0 0.0
    %1107 = vmatprep.subr.mxu0 0.0
    %1108 = vmatpush1.msra.mxu0 0.0
    %1109 = vmatprep.subr.mxu0 0.0
    %1110 = vmatpush1.msra.mxu0 0.0
    %1111 = vmatprep.subr.mxu0 0.0
    %1112 = vmatpush1.msra.mxu0 0.0
    %1113 = vmatprep.subr.mxu0 0.0
    %1114 = vmatpush1.msra.mxu0 0.0
    %1115 = vmatprep.subr.mxu0 0.0
    %1116 = vmatpush1.msra.mxu0 0.0
    %1117 = vmatprep.subr.mxu0 0.0
    %1118 = vmatpush1.msra.mxu0 0.0
    %1119 = vmatprep.subr.mxu0 0.0
    %1120 = vmatpush1.msra.mxu0 0.0
    %1121 = vmatprep.mubr.f32.mxu0 0.0
    %1122 = vmatmul.mubr.f32.gmra.mrb[0].mxu0 %v1050
    %v1123 = vpop.f32.mrb[0].mxu0
    %v1124 = vadd.f32 0.0, %v1123
    %v1125 = vpop.f32.mrb[0].mxu0
    %v1126 = vadd.f32 0.0, %v1125
    %1127 = vdwg.mxu0
    %v1128 = vadd.f32 %v1054, %v1124
    %v1129 = vadd.f32 %v1055, %v1126
    %v1130 = vxor.u32 %v1128, 2147483648
    %v1131 = vxor.u32 %v1129, 2147483648
    %v1132 = vmul.f32 %v1130, 1.442695
    %v1133 = vpow.pop %v1132
    %v1134 = vmul.f32 %v1131, 1.442695
    %v1135 = vpow.pop %v1134
    %v1136 = vadd.f32 %v1133, 1.0
    %v1137 = vadd.f32 %v1135, 1.0
    %v1138 = vrcp.pop %v1136
    %v1139 = vmul.f32 1.0, %v1138
    %v1140 = vrcp.pop %v1137
    %v1141 = vmul.f32 1.0, %v1140
    %v1142 = vmul.f32 %v1141, %v1050
    %1143 = vmatprep.subr.mxu0 0.0
    %1144 = vmatpush1.msra.mxu0 %v460
    %1145 = vmatprep.subr.mxu0 0.0
    %1146 = vmatpush1.msra.mxu0 %v461
    %1147 = vmatprep.subr.mxu0 0.0
    %1148 = vmatpush1.msra.mxu0 %v462
    %1149 = vmatprep.subr.mxu0 0.0
    %1150 = vmatpush1.msra.mxu0 %v463
    %1151 = vmatprep.subr.mxu0 0.0
    %1152 = vmatpush1.msra.mxu0 %v464
    %1153 = vmatprep.subr.mxu0 0.0
    %1154 = vmatpush1.msra.mxu0 %v465
    %1155 = vmatprep.subr.mxu0 0.0
    %1156 = vmatpush1.msra.mxu0 %v466
    %1157 = vmatprep.subr.mxu0 0.0
    %1158 = vmatpush1.msra.mxu0 %v467
    %1159 = vmatprep.subr.mxu0 0.0
    %1160 = vmatpush1.msra.mxu0 %v468
    %1161 = vmatprep.subr.mxu0 0.0
    %1162 = vmatpush1.msra.mxu0 %v469
    %1163 = vmatprep.subr.mxu0 0.0
    %1164 = vmatpush1.msra.mxu0 %v470
    %1165 = vmatprep.subr.mxu0 0.0
    %1166 = vmatpush1.msra.mxu0 %v471
    %1167 = vmatprep.subr.mxu0 0.0
    %1168 = vmatpush1.msra.mxu0 %v472
    %1169 = vmatprep.subr.mxu0 0.0
    %1170 = vmatpush1.msra.mxu0 %v473
    %1171 = vmatprep.subr.mxu0 0.0
    %1172 = vmatpush1.msra.mxu0 %v474
    %1173 = vmatprep.subr.mxu0 0.0
    %1174 = vmatpush1.msra.mxu0 %v475
    %1175 = vmatprep.subr.mxu0 0.0
    %1176 = vmatpush1.msra.mxu0 0.0
    %1177 = vmatprep.subr.mxu0 0.0
    %1178 = vmatpush1.msra.mxu0 0.0
    %1179 = vmatprep.subr.mxu0 0.0
    %1180 = vmatpush1.msra.mxu0 0.0
    %1181 = vmatprep.subr.mxu0 0.0
    %1182 = vmatpush1.msra.mxu0 0.0
    %1183 = vmatprep.subr.mxu0 0.0
    %1184 = vmatpush1.msra.mxu0 0.0
    %1185 = vmatprep.subr.mxu0 0.0
    %1186 = vmatpush1.msra.mxu0 0.0
    %1187 = vmatprep.subr.mxu0 0.0
    %1188 = vmatpush1.msra.mxu0 0.0
    %1189 = vmatprep.subr.mxu0 0.0
    %1190 = vmatpush1.msra.mxu0 0.0
    %1191 = vmatprep.subr.mxu0 0.0
    %1192 = vmatpush1.msra.mxu0 0.0
    %1193 = vmatprep.subr.mxu0 0.0
    %1194 = vmatpush1.msra.mxu0 0.0
    %1195 = vmatprep.subr.mxu0 0.0
    %1196 = vmatpush1.msra.mxu0 0.0
    %1197 = vmatprep.subr.mxu0 0.0
    %1198 = vmatpush1.msra.mxu0 0.0
    %1199 = vmatprep.subr.mxu0 0.0
    %1200 = vmatpush1.msra.mxu0 0.0
    %1201 = vmatprep.subr.mxu0 0.0
    %1202 = vmatpush1.msra.mxu0 0.0
    %1203 = vmatprep.subr.mxu0 0.0
    %1204 = vmatpush1.msra.mxu0 0.0
    %1205 = vmatprep.subr.mxu0 0.0
    %1206 = vmatpush1.msra.mxu0 0.0
    %1207 = vmatprep.mubr.f32.mxu0 0.0
    %1208 = vmatmul.mubr.f32.gmra.mrb[0].mxu0 %v1142
    %v1209 = vpop.f32.mrb[0].mxu0
    %v1210 = vadd.f32 0.0, %v1209
    %v1211 = vpop.f32.mrb[0].mxu0
    %1212 = vdwg.mxu0
    %v1213 = vadd.f32 %v1056, %v1210
    %v1214 = vtanh.pop %v1213
    %v1215 = vsub.f32 %v1214, %v1050
    %v1216 = vmul.f32 %v1139, %v1215
    %v1217 = vadd.f32 %v1050, %v1216
    %s1218 = smul.u32 5, 3
    %s1219 = smul.addr %s1218, 8
    %s1220 = scalar_lea.vmem [#allocation2], %s1219
    %v1221 = vld [vmem:[%s1220] sm:$0xff]
    %v1222 = vld [vmem:[%s1220 + $0x8] sm:$0xff]
    %v1223 = vld [vmem:[%s1220 + $0x10] sm:$0xff]
    %1224 = vmatprep.subr.mxu0 %v343
    %1225 = vmatpush1.msra.mxu0 %v342
    %1226 = vmatprep.subr.mxu0 %v345
    %1227 = vmatpush1.msra.mxu0 %v344
    %1228 = vmatprep.subr.mxu0 %v347
    %1229 = vmatpush1.msra.mxu0 %v346
    %1230 = vmatprep.subr.mxu0 %v349
    %1231 = vmatpush1.msra.mxu0 %v348
    %1232 = vmatprep.subr.mxu0 %v351
    %1233 = vmatpush1.msra.mxu0 %v350
    %1234 = vmatprep.subr.mxu0 %v353
    %1235 = vmatpush1.msra.mxu0 %v352
    %1236 = vmatprep.subr.mxu0 %v355
    %1237 = vmatpush1.msra.mxu0 %v354
    %1238 = vmatprep.subr.mxu0 %v357
    %1239 = vmatpush1.msra.mxu0 %v356
    %1240 = vmatprep.subr.mxu0 %v359
    %1241 = vmatpush1.msra.mxu0 %v358
    %1242 = vmatprep.subr.mxu0 %v361
    %1243 = vmatpush1.msra.mxu0 %v360
    %1244 = vmatprep.subr.mxu0 %v363
    %1245 = vmatpush1.msra.mxu0 %v362
    %1246 = vmatprep.subr.mxu0 %v365
    %1247 = vmatpush1.msra.mxu0 %v364
    %1248 = vmatprep.subr.mxu0 %v367
    %1249 = vmatpush1.msra.mxu0 %v366
    %1250 = vmatprep.subr.mxu0 %v369
    %1251 = vmatpush1.msra.mxu0 %v368
    %1252 = vmatprep.subr.mxu0 %v371
    %1253 = vmatpush1.msra.mxu0 %v370
    %1254 = vmatprep.subr.mxu0 %v373
    %1255 = vmatpush1.msra.mxu0 %v372
    %1256 = vmatprep.subr.mxu0 0.0
    %1257 = vmatpush1.msra.mxu0 0.0
    %1258 = vmatprep.subr.mxu0 0.0
    %1259 = vmatpush1.msra.mxu0 0.0
    %1260 = vmatprep.subr.mxu0 0.0
    %1261 = vmatpush1.msra.mxu0 0.0
    %1262 = vmatprep.subr.mxu0 0.0
    %1263 = vmatpush1.msra.mxu0 0.0
    %1264 = vmatprep.subr.mxu0 0.0
    %1265 = vmatpush1.msra.mxu0 0.0
    %1266 = vmatprep.subr.mxu0 0.0
    %1267 = vmatpush1.msra.mxu0 0.0
    %1268 = vmatprep.subr.mxu0 0.0
    %1269 = vmatpush1.msra.mxu0 0.0
    %1270 = vmatprep.subr.mxu0 0.0
    %1271 = vmatpush1.msra.mxu0 0.0
    %1272 = vmatprep.subr.mxu0 0.0
    %1273 = vmatpush1.msra.mxu0 0.0
    %1274 = vmatprep.subr.mxu0 0.0
    %1275 = vmatpush1.msra.mxu0 0.0
    %1276 = vmatprep.subr.mxu0 0.0
    %1277 = vmatpush1.msra.mxu0 0.0
    %1278 = vmatprep.subr.mxu0 0.0
    %1279 = vmatpush1.msra.mxu0 0.0
    %1280 = vmatprep.subr.mxu0 0.0
    %1281 = vmatpush1.msra.mxu0 0.0
    %1282 = vmatprep.subr.mxu0 0.0
    %1283 = vmatpush1.msra.mxu0 0.0
    %1284 = vmatprep.subr.mxu0 0.0
    %1285 = vmatpush1.msra.mxu0 0.0
    %1286 = vmatprep.subr.mxu0 0.0
    %1287 = vmatpush1.msra.mxu0 0.0
    %1288 = vmatprep.mubr.f32.mxu0 0.0
    %1289 = vmatmul.mubr.f32.gmra.mrb[0].mxu0 %v1217
    %v1290 = vpop.f32.mrb[0].mxu0
    %v1291 = vadd.f32 0.0, %v1290
    %v1292 = vpop.f32.mrb[0].mxu0
    %v1293 = vadd.f32 0.0, %v1292
    %1294 = vdwg.mxu0
    %v1295 = vadd.f32 %v1221, %v1291
    %v1296 = vadd.f32 %v1222, %v1293
    %v1297 = vxor.u32 %v1295, 2147483648
    %v1298 = vxor.u32 %v1296, 2147483648
    %v1299 = vmul.f32 %v1297, 1.442695
    %v1300 = vpow.pop %v1299
    %v1301 = vmul.f32 %v1298, 1.442695
    %v1302 = vpow.pop %v1301
    %v1303 = vadd.f32 %v1300, 1.0
    %v1304 = vadd.f32 %v1302, 1.0
    %v1305 = vrcp.pop %v1303
    %v1306 = vmul.f32 1.0, %v1305
    %v1307 = vrcp.pop %v1304
    %v1308 = vmul.f32 1.0, %v1307
    %v1309 = vmul.f32 %v1308, %v1217
    %1310 = vmatprep.subr.mxu0 0.0
    %1311 = vmatpush1.msra.mxu0 %v460
    %1312 = vmatprep.subr.mxu0 0.0
    %1313 = vmatpush1.msra.mxu0 %v461
    %1314 = vmatprep.subr.mxu0 0.0
    %1315 = vmatpush1.msra.mxu0 %v462
    %1316 = vmatprep.subr.mxu0 0.0
    %1317 = vmatpush1.msra.mxu0 %v463
    %1318 = vmatprep.subr.mxu0 0.0
    %1319 = vmatpush1.msra.mxu0 %v464
    %1320 = vmatprep.subr.mxu0 0.0
    %1321 = vmatpush1.msra.mxu0 %v465
    %1322 = vmatprep.subr.mxu0 0.0
    %1323 = vmatpush1.msra.mxu0 %v466
    %1324 = vmatprep.subr.mxu0 0.0
    %1325 = vmatpush1.msra.mxu0 %v467
    %1326 = vmatprep.subr.mxu0 0.0
    %1327 = vmatpush1.msra.mxu0 %v468
    %1328 = vmatprep.subr.mxu0 0.0
    %1329 = vmatpush1.msra.mxu0 %v469
    %1330 = vmatprep.subr.mxu0 0.0
    %1331 = vmatpush1.msra.mxu0 %v470
    %1332 = vmatprep.subr.mxu0 0.0
    %1333 = vmatpush1.msra.mxu0 %v471
    %1334 = vmatprep.subr.mxu0 0.0
    %1335 = vmatpush1.msra.mxu0 %v472
    %1336 = vmatprep.subr.mxu0 0.0
    %1337 = vmatpush1.msra.mxu0 %v473
    %1338 = vmatprep.subr.mxu0 0.0
    %1339 = vmatpush1.msra.mxu0 %v474
    %1340 = vmatprep.subr.mxu0 0.0
    %1341 = vmatpush1.msra.mxu0 %v475
    %1342 = vmatprep.subr.mxu0 0.0
    %1343 = vmatpush1.msra.mxu0 0.0
    %1344 = vmatprep.subr.mxu0 0.0
    %1345 = vmatpush1.msra.mxu0 0.0
    %1346 = vmatprep.subr.mxu0 0.0
    %1347 = vmatpush1.msra.mxu0 0.0
    %1348 = vmatprep.subr.mxu0 0.0
    %1349 = vmatpush1.msra.mxu0 0.0
    %1350 = vmatprep.subr.mxu0 0.0
    %1351 = vmatpush1.msra.mxu0 0.0
    %1352 = vmatprep.subr.mxu0 0.0
    %1353 = vmatpush1.msra.mxu0 0.0
    %1354 = vmatprep.subr.mxu0 0.0
    %1355 = vmatpush1.msra.mxu0 0.0
    %1356 = vmatprep.subr.mxu0 0.0
    %1357 = vmatpush1.msra.mxu0 0.0
    %1358 = vmatprep.subr.mxu0 0.0
    %1359 = vmatpush1.msra.mxu0 0.0
    %1360 = vmatprep.subr.mxu0 0.0
    %1361 = vmatpush1.msra.mxu0 0.0
    %1362 = vmatprep.subr.mxu0 0.0
    %1363 = vmatpush1.msra.mxu0 0.0
    %1364 = vmatprep.subr.mxu0 0.0
    %1365 = vmatpush1.msra.mxu0 0.0
    %1366 = vmatprep.subr.mxu0 0.0
    %1367 = vmatpush1.msra.mxu0 0.0
    %1368 = vmatprep.subr.mxu0 0.0
    %1369 = vmatpush1.msra.mxu0 0.0
    %1370 = vmatprep.subr.mxu0 0.0
    %1371 = vmatpush1.msra.mxu0 0.0
    %1372 = vmatprep.subr.mxu0 0.0
    %1373 = vmatpush1.msra.mxu0 0.0
    %1374 = vmatprep.mubr.f32.mxu0 0.0
    %1375 = vmatmul.mubr.f32.gmra.mrb[0].mxu0 %v1309
    %v1376 = vpop.f32.mrb[0].mxu0
    %v1377 = vadd.f32 0.0, %v1376
    %v1378 = vpop.f32.mrb[0].mxu0
    %1379 = vdwg.mxu0
    %v1380 = vadd.f32 %v1223, %v1377
    %v1381 = vtanh.pop %v1380
    %v1382 = vsub.f32 %v1381, %v1217
    %v1383 = vmul.f32 %v1306, %v1382
    %v1384 = vadd.f32 %v1217, %v1383
    %s1385 = smul.u32 6, 3
    %s1386 = smul.addr %s1385, 8
    %s1387 = scalar_lea.vmem [#allocation2], %s1386
    %v1388 = vld [vmem:[%s1387] sm:$0xff]
    %v1389 = vld [vmem:[%s1387 + $0x8] sm:$0xff]
    %v1390 = vld [vmem:[%s1387 + $0x10] sm:$0xff]
    %1391 = vmatprep.subr.mxu0 %v343
    %1392 = vmatpush1.msra.mxu0 %v342
    %1393 = vmatprep.subr.mxu0 %v345
    %1394 = vmatpush1.msra.mxu0 %v344
    %1395 = vmatprep.subr.mxu0 %v347
    %1396 = vmatpush1.msra.mxu0 %v346
    %1397 = vmatprep.subr.mxu0 %v349
    %1398 = vmatpush1.msra.mxu0 %v348
    %1399 = vmatprep.subr.mxu0 %v351
    %1400 = vmatpush1.msra.mxu0 %v350
    %1401 = vmatprep.subr.mxu0 %v353
    %1402 = vmatpush1.msra.mxu0 %v352
    %1403 = vmatprep.subr.mxu0 %v355
    %1404 = vmatpush1.msra.mxu0 %v354
    %1405 = vmatprep.subr.mxu0 %v357
    %1406 = vmatpush1.msra.mxu0 %v356
    %1407 = vmatprep.subr.mxu0 %v359
    %1408 = vmatpush1.msra.mxu0 %v358
    %1409 = vmatprep.subr.mxu0 %v361
    %1410 = vmatpush1.msra.mxu0 %v360
    %1411 = vmatprep.subr.mxu0 %v363
    %1412 = vmatpush1.msra.mxu0 %v362
    %1413 = vmatprep.subr.mxu0 %v365
    %1414 = vmatpush1.msra.mxu0 %v364
    %1415 = vmatprep.subr.mxu0 %v367
    %1416 = vmatpush1.msra.mxu0 %v366
    %1417 = vmatprep.subr.mxu0 %v369
    %1418 = vmatpush1.msra.mxu0 %v368
    %1419 = vmatprep.subr.mxu0 %v371
    %1420 = vmatpush1.msra.mxu0 %v370
    %1421 = vmatprep.subr.mxu0 %v373
    %1422 = vmatpush1.msra.mxu0 %v372
    %1423 = vmatprep.subr.mxu0 0.0
    %1424 = vmatpush1.msra.mxu0 0.0
    %1425 = vmatprep.subr.mxu0 0.0
    %1426 = vmatpush1.msra.mxu0 0.0
    %1427 = vmatprep.subr.mxu0 0.0
    %1428 = vmatpush1.msra.mxu0 0.0
    %1429 = vmatprep.subr.mxu0 0.0
    %1430 = vmatpush1.msra.mxu0 0.0
    %1431 = vmatprep.subr.mxu0 0.0
    %1432 = vmatpush1.msra.mxu0 0.0
    %1433 = vmatprep.subr.mxu0 0.0
    %1434 = vmatpush1.msra.mxu0 0.0
    %1435 = vmatprep.subr.mxu0 0.0
    %1436 = vmatpush1.msra.mxu0 0.0
    %1437 = vmatprep.subr.mxu0 0.0
    %1438 = vmatpush1.msra.mxu0 0.0
    %1439 = vmatprep.subr.mxu0 0.0
    %1440 = vmatpush1.msra.mxu0 0.0
    %1441 = vmatprep.subr.mxu0 0.0
    %1442 = vmatpush1.msra.mxu0 0.0
    %1443 = vmatprep.subr.mxu0 0.0
    %1444 = vmatpush1.msra.mxu0 0.0
    %1445 = vmatprep.subr.mxu0 0.0
    %1446 = vmatpush1.msra.mxu0 0.0
    %1447 = vmatprep.subr.mxu0 0.0
    %1448 = vmatpush1.msra.mxu0 0.0
    %1449 = vmatprep.subr.mxu0 0.0
    %1450 = vmatpush1.msra.mxu0 0.0
    %1451 = vmatprep.subr.mxu0 0.0
    %1452 = vmatpush1.msra.mxu0 0.0
    %1453 = vmatprep.subr.mxu0 0.0
    %1454 = vmatpush1.msra.mxu0 0.0
    %1455 = vmatprep.mubr.f32.mxu0 0.0
    %1456 = vmatmul.mubr.f32.gmra.mrb[0].mxu0 %v1384
    %v1457 = vpop.f32.mrb[0].mxu0
    %v1458 = vadd.f32 0.0, %v1457
    %v1459 = vpop.f32.mrb[0].mxu0
    %v1460 = vadd.f32 0.0, %v1459
    %1461 = vdwg.mxu0
    %v1462 = vadd.f32 %v1388, %v1458
    %v1463 = vadd.f32 %v1389, %v1460
    %v1464 = vxor.u32 %v1462, 2147483648
    %v1465 = vxor.u32 %v1463, 2147483648
    %v1466 = vmul.f32 %v1464, 1.442695
    %v1467 = vpow.pop %v1466
    %v1468 = vmul.f32 %v1465, 1.442695
    %v1469 = vpow.pop %v1468
    %v1470 = vadd.f32 %v1467, 1.0
    %v1471 = vadd.f32 %v1469, 1.0
    %v1472 = vrcp.pop %v1470
    %v1473 = vmul.f32 1.0, %v1472
    %v1474 = vrcp.pop %v1471
    %v1475 = vmul.f32 1.0, %v1474
    %v1476 = vmul.f32 %v1475, %v1384
    %1477 = vmatprep.subr.mxu0 0.0
    %1478 = vmatpush1.msra.mxu0 %v460
    %1479 = vmatprep.subr.mxu0 0.0
    %1480 = vmatpush1.msra.mxu0 %v461
    %1481 = vmatprep.subr.mxu0 0.0
    %1482 = vmatpush1.msra.mxu0 %v462
    %1483 = vmatprep.subr.mxu0 0.0
    %1484 = vmatpush1.msra.mxu0 %v463
    %1485 = vmatprep.subr.mxu0 0.0
    %1486 = vmatpush1.msra.mxu0 %v464
    %1487 = vmatprep.subr.mxu0 0.0
    %1488 = vmatpush1.msra.mxu0 %v465
    %1489 = vmatprep.subr.mxu0 0.0
    %1490 = vmatpush1.msra.mxu0 %v466
    %1491 = vmatprep.subr.mxu0 0.0
    %1492 = vmatpush1.msra.mxu0 %v467
    %1493 = vmatprep.subr.mxu0 0.0
    %1494 = vmatpush1.msra.mxu0 %v468
    %1495 = vmatprep.subr.mxu0 0.0
    %1496 = vmatpush1.msra.mxu0 %v469
    %1497 = vmatprep.subr.mxu0 0.0
    %1498 = vmatpush1.msra.mxu0 %v470
    %1499 = vmatprep.subr.mxu0 0.0
    %1500 = vmatpush1.msra.mxu0 %v471
    %1501 = vmatprep.subr.mxu0 0.0
    %1502 = vmatpush1.msra.mxu0 %v472
    %1503 = vmatprep.subr.mxu0 0.0
    %1504 = vmatpush1.msra.mxu0 %v473
    %1505 = vmatprep.subr.mxu0 0.0
    %1506 = vmatpush1.msra.mxu0 %v474
    %1507 = vmatprep.subr.mxu0 0.0
    %1508 = vmatpush1.msra.mxu0 %v475
    %1509 = vmatprep.subr.mxu0 0.0
    %1510 = vmatpush1.msra.mxu0 0.0
    %1511 = vmatprep.subr.mxu0 0.0
    %1512 = vmatpush1.msra.mxu0 0.0
    %1513 = vmatprep.subr.mxu0 0.0
    %1514 = vmatpush1.msra.mxu0 0.0
    %1515 = vmatprep.subr.mxu0 0.0
    %1516 = vmatpush1.msra.mxu0 0.0
    %1517 = vmatprep.subr.mxu0 0.0
    %1518 = vmatpush1.msra.mxu0 0.0
    %1519 = vmatprep.subr.mxu0 0.0
    %1520 = vmatpush1.msra.mxu0 0.0
    %1521 = vmatprep.subr.mxu0 0.0
    %1522 = vmatpush1.msra.mxu0 0.0
    %1523 = vmatprep.subr.mxu0 0.0
    %1524 = vmatpush1.msra.mxu0 0.0
    %1525 = vmatprep.subr.mxu0 0.0
    %1526 = vmatpush1.msra.mxu0 0.0
    %1527 = vmatprep.subr.mxu0 0.0
    %1528 = vmatpush1.msra.mxu0 0.0
    %1529 = vmatprep.subr.mxu0 0.0
    %1530 = vmatpush1.msra.mxu0 0.0
    %1531 = vmatprep.subr.mxu0 0.0
    %1532 = vmatpush1.msra.mxu0 0.0
    %1533 = vmatprep.subr.mxu0 0.0
    %1534 = vmatpush1.msra.mxu0 0.0
    %1535 = vmatprep.subr.mxu0 0.0
    %1536 = vmatpush1.msra.mxu0 0.0
    %1537 = vmatprep.subr.mxu0 0.0
    %1538 = vmatpush1.msra.mxu0 0.0
    %1539 = vmatprep.subr.mxu0 0.0
    %1540 = vmatpush1.msra.mxu0 0.0
    %1541 = vmatprep.mubr.f32.mxu0 0.0
    %1542 = vmatmul.mubr.f32.gmra.mrb[0].mxu0 %v1476
    %v1543 = vpop.f32.mrb[0].mxu0
    %v1544 = vadd.f32 0.0, %v1543
    %v1545 = vpop.f32.mrb[0].mxu0
    %1546 = vdwg.mxu0
    %v1547 = vadd.f32 %v1390, %v1544
    %v1548 = vtanh.pop %v1547
    %v1549 = vsub.f32 %v1548, %v1384
    %v1550 = vmul.f32 %v1473, %v1549
    %v1551 = vadd.f32 %v1384, %v1550
    %s1552 = smul.u32 7, 3
    %s1553 = smul.addr %s1552, 8
    %s1554 = scalar_lea.vmem [#allocation2], %s1553
    %v1555 = vld [vmem:[%s1554] sm:$0xff]
    %v1556 = vld [vmem:[%s1554 + $0x8] sm:$0xff]
    %v1557 = vld [vmem:[%s1554 + $0x10] sm:$0xff]
    %1558 = vmatprep.subr.mxu0 %v343
    %1559 = vmatpush1.msra.mxu0 %v342
    %1560 = vmatprep.subr.mxu0 %v345
    %1561 = vmatpush1.msra.mxu0 %v344
    %1562 = vmatprep.subr.mxu0 %v347
    %1563 = vmatpush1.msra.mxu0 %v346
    %1564 = vmatprep.subr.mxu0 %v349
    %1565 = vmatpush1.msra.mxu0 %v348
    %1566 = vmatprep.subr.mxu0 %v351
    %1567 = vmatpush1.msra.mxu0 %v350
    %1568 = vmatprep.subr.mxu0 %v353
    %1569 = vmatpush1.msra.mxu0 %v352
    %1570 = vmatprep.subr.mxu0 %v355
    %1571 = vmatpush1.msra.mxu0 %v354
    %1572 = vmatprep.subr.mxu0 %v357
    %1573 = vmatpush1.msra.mxu0 %v356
    %1574 = vmatprep.subr.mxu0 %v359
    %1575 = vmatpush1.msra.mxu0 %v358
    %1576 = vmatprep.subr.mxu0 %v361
    %1577 = vmatpush1.msra.mxu0 %v360
    %1578 = vmatprep.subr.mxu0 %v363
    %1579 = vmatpush1.msra.mxu0 %v362
    %1580 = vmatprep.subr.mxu0 %v365
    %1581 = vmatpush1.msra.mxu0 %v364
    %1582 = vmatprep.subr.mxu0 %v367
    %1583 = vmatpush1.msra.mxu0 %v366
    %1584 = vmatprep.subr.mxu0 %v369
    %1585 = vmatpush1.msra.mxu0 %v368
    %1586 = vmatprep.subr.mxu0 %v371
    %1587 = vmatpush1.msra.mxu0 %v370
    %1588 = vmatprep.subr.mxu0 %v373
    %1589 = vmatpush1.msra.mxu0 %v372
    %1590 = vmatprep.subr.mxu0 0.0
    %1591 = vmatpush1.msra.mxu0 0.0
    %1592 = vmatprep.subr.mxu0 0.0
    %1593 = vmatpush1.msra.mxu0 0.0
    %1594 = vmatprep.subr.mxu0 0.0
    %1595 = vmatpush1.msra.mxu0 0.0
    %1596 = vmatprep.subr.mxu0 0.0
    %1597 = vmatpush1.msra.mxu0 0.0
    %1598 = vmatprep.subr.mxu0 0.0
    %1599 = vmatpush1.msra.mxu0 0.0
    %1600 = vmatprep.subr.mxu0 0.0
    %1601 = vmatpush1.msra.mxu0 0.0
    %1602 = vmatprep.subr.mxu0 0.0
    %1603 = vmatpush1.msra.mxu0 0.0
    %1604 = vmatprep.subr.mxu0 0.0
    %1605 = vmatpush1.msra.mxu0 0.0
    %1606 = vmatprep.subr.mxu0 0.0
    %1607 = vmatpush1.msra.mxu0 0.0
    %1608 = vmatprep.subr.mxu0 0.0
    %1609 = vmatpush1.msra.mxu0 0.0
    %1610 = vmatprep.subr.mxu0 0.0
    %1611 = vmatpush1.msra.mxu0 0.0
    %1612 = vmatprep.subr.mxu0 0.0
    %1613 = vmatpush1.msra.mxu0 0.0
    %1614 = vmatprep.subr.mxu0 0.0
    %1615 = vmatpush1.msra.mxu0 0.0
    %1616 = vmatprep.subr.mxu0 0.0
    %1617 = vmatpush1.msra.mxu0 0.0
    %1618 = vmatprep.subr.mxu0 0.0
    %1619 = vmatpush1.msra.mxu0 0.0
    %1620 = vmatprep.subr.mxu0 0.0
    %1621 = vmatpush1.msra.mxu0 0.0
    %1622 = vmatprep.mubr.f32.mxu0 0.0
    %1623 = vmatmul.mubr.f32.gmra.mrb[0].mxu0 %v1551
    %v1624 = vpop.f32.mrb[0].mxu0
    %v1625 = vadd.f32 0.0, %v1624
    %v1626 = vpop.f32.mrb[0].mxu0
    %v1627 = vadd.f32 0.0, %v1626
    %1628 = vdwg.mxu0
    %v1629 = vadd.f32 %v1555, %v1625
    %v1630 = vadd.f32 %v1556, %v1627
    %v1631 = vxor.u32 %v1629, 2147483648
    %v1632 = vxor.u32 %v1630, 2147483648
    %v1633 = vmul.f32 %v1631, 1.442695
    %v1634 = vpow.pop %v1633
    %v1635 = vmul.f32 %v1632, 1.442695
    %v1636 = vpow.pop %v1635
    %v1637 = vadd.f32 %v1634, 1.0
    %v1638 = vadd.f32 %v1636, 1.0
    %v1639 = vrcp.pop %v1637
    %v1640 = vmul.f32 1.0, %v1639
    %v1641 = vrcp.pop %v1638
    %v1642 = vmul.f32 1.0, %v1641
    %v1643 = vmul.f32 %v1642, %v1551
    %1644 = vmatprep.subr.mxu0 0.0
    %1645 = vmatpush1.msra.mxu0 %v460
    %1646 = vmatprep.subr.mxu0 0.0
    %1647 = vmatpush1.msra.mxu0 %v461
    %1648 = vmatprep.subr.mxu0 0.0
    %1649 = vmatpush1.msra.mxu0 %v462
    %1650 = vmatprep.subr.mxu0 0.0
    %1651 = vmatpush1.msra.mxu0 %v463
    %1652 = vmatprep.subr.mxu0 0.0
    %1653 = vmatpush1.msra.mxu0 %v464
    %1654 = vmatprep.subr.mxu0 0.0
    %1655 = vmatpush1.msra.mxu0 %v465
    %1656 = vmatprep.subr.mxu0 0.0
    %1657 = vmatpush1.msra.mxu0 %v466
    %1658 = vmatprep.subr.mxu0 0.0
    %1659 = vmatpush1.msra.mxu0 %v467
    %1660 = vmatprep.subr.mxu0 0.0
    %1661 = vmatpush1.msra.mxu0 %v468
    %1662 = vmatprep.subr.mxu0 0.0
    %1663 = vmatpush1.msra.mxu0 %v469
    %1664 = vmatprep.subr.mxu0 0.0
    %1665 = vmatpush1.msra.mxu0 %v470
    %1666 = vmatprep.subr.mxu0 0.0
    %1667 = vmatpush1.msra.mxu0 %v471
    %1668 = vmatprep.subr.mxu0 0.0
    %1669 = vmatpush1.msra.mxu0 %v472
    %1670 = vmatprep.subr.mxu0 0.0
    %1671 = vmatpush1.msra.mxu0 %v473
    %1672 = vmatprep.subr.mxu0 0.0
    %1673 = vmatpush1.msra.mxu0 %v474
    %1674 = vmatprep.subr.mxu0 0.0
    %1675 = vmatpush1.msra.mxu0 %v475
    %1676 = vmatprep.subr.mxu0 0.0
    %1677 = vmatpush1.msra.mxu0 0.0
    %1678 = vmatprep.subr.mxu0 0.0
    %1679 = vmatpush1.msra.mxu0 0.0
    %1680 = vmatprep.subr.mxu0 0.0
    %1681 = vmatpush1.msra.mxu0 0.0
    %1682 = vmatprep.subr.mxu0 0.0
    %1683 = vmatpush1.msra.mxu0 0.0
    %1684 = vmatprep.subr.mxu0 0.0
    %1685 = vmatpush1.msra.mxu0 0.0
    %1686 = vmatprep.subr.mxu0 0.0
    %1687 = vmatpush1.msra.mxu0 0.0
    %1688 = vmatprep.subr.mxu0 0.0
    %1689 = vmatpush1.msra.mxu0 0.0
    %1690 = vmatprep.subr.mxu0 0.0
    %1691 = vmatpush1.msra.mxu0 0.0
    %1692 = vmatprep.subr.mxu0 0.0
    %1693 = vmatpush1.msra.mxu0 0.0
    %1694 = vmatprep.subr.mxu0 0.0
    %1695 = vmatpush1.msra.mxu0 0.0
    %1696 = vmatprep.subr.mxu0 0.0
    %1697 = vmatpush1.msra.mxu0 0.0
    %1698 = vmatprep.subr.mxu0 0.0
    %1699 = vmatpush1.msra.mxu0 0.0
    %1700 = vmatprep.subr.mxu0 0.0
    %1701 = vmatpush1.msra.mxu0 0.0
    %1702 = vmatprep.subr.mxu0 0.0
    %1703 = vmatpush1.msra.mxu0 0.0
    %1704 = vmatprep.subr.mxu0 0.0
    %1705 = vmatpush1.msra.mxu0 0.0
    %1706 = vmatprep.subr.mxu0 0.0
    %1707 = vmatpush1.msra.mxu0 0.0
    %1708 = vmatprep.mubr.f32.mxu0 0.0
    %1709 = vmatmul.mubr.f32.gmra.mrb[0].mxu0 %v1643
    %v1710 = vpop.f32.mrb[0].mxu0
    %v1711 = vadd.f32 0.0, %v1710
    %v1712 = vpop.f32.mrb[0].mxu0
    %1713 = vdwg.mxu0
    %v1714 = vadd.f32 %v1557, %v1711
    %v1715 = vtanh.pop %v1714
    %v1716 = vsub.f32 %v1715, %v1551
    %v1717 = vmul.f32 %v1640, %v1716
    %v1718 = vadd.f32 %v1551, %v1717
    %1719 = vst [vmem:[#allocation3] sm:$0xff] %v1718
    // Predicated region
    $region22: #{gru_forward.1} parent=1 // pred_check
      _
    $region23: #{gru_forward.1} parent=1 // pred_check_branch
      %1721 = sbr.rel (0) target = $region25
    $region24: #{gru_forward.1} parent=1 // pred_region
      %s1723 = ssub.s32 128, 128
      %1724 = vsyncadd [#allocation4], %s1723
      %s1726 = sshll.u32 [#allocation3], 4
      %s1727 = int_to_ptr.vmem [resolvable:$true] %s1726
      %1729 = dma.vmem_to_hbm [thread:$0]  %s1727, 128, %s5, [#allocation4]
    $region25: #{gru_forward.1} parent=1 // pred_fallthru
      _
    // Predicated region
    $region26: #{gru_forward.1} parent=1 // pred_check
      _
    $region27: #{gru_forward.1} parent=1 // pred_check_branch
      %1731 = sbr.rel (0) target = $region29
    $region28: #{gru_forward.1} parent=1 // pred_region
      %1732 = dma.done [#allocation4], 128
    $region29: #{gru_forward.1} parent=1 // pred_fallthru
      _
    %1733 = vsyncpa [#allocation4], 1

</llo_original>
